<compile_context>
chip_gen: v7x
topology: tpu7x:2x2x1
jax: 0.10.0
libtpu: 0.0.40
codegen_flags: <defaults>
</compile_context>

<pallas_src>
import functools
import math

import jax
import jax.numpy as jnp
from jax import lax
from jax.experimental import pallas as pl
from jax.experimental.pallas import tpu as pltpu

GN_EPS = 1e-5
NUM_GROUPS = 32
_TRANS_B = (((1,), (1,)), ((), ()))  # contract last dims of both operands (rhs "transposed")


def _vmem_limit_bytes():
    """Per-generation scoped-VMEM budget (~80% of physical), with a safe fallback."""
    try:
        cap = int(pltpu.get_tpu_info().vmem_capacity_bytes)
    except Exception:
        cap = 64 * 1024 * 1024
    return max(32 * 1024 * 1024, int(cap * 0.8))


def _choose_tile(s, max_tile):
    """Largest tile <= max_tile that divides s; multiples of 128 whenever s is actually tiled."""
    if s <= max_tile:
        return s
    for t in range(max_tile, 127, -128):
        if s % t == 0:
            return t
    return s


# --------------------------------------------------------------------------------------
# Pass A: fused GroupNorm (two-pass stats, resident slab) + Q/K/V projection
# --------------------------------------------------------------------------------------
def _gn_qkv_kernel(x_ref, gamma_ref, beta_ref, gmat_ref, gmat_t_ref,
                   w_qv_ref, b_qv_ref, wk_t_ref, bk_ref,
                   q_ref, k_ref, v_ref, *, t, n_chunks, inv_denom):
    c = x_ref.shape[1]
    ones_t = jnp.ones((t, 1), jnp.float32)               # hoisted out of all chunk loops

    # ---- stats pass 1: per-channel sums over S (spatial reduction on the MXU) ----
    sum_c = jnp.zeros((c, 1), jnp.float32)
    for si in range(n_chunks):
        xc = x_ref[0, :, si * t:(si + 1) * t]             # (C, t) f32, VMEM-resident
        sum_c = sum_c + jnp.dot(xc, ones_t, preferred_element_type=jnp.float32)
    mean_g = jnp.dot(gmat_t_ref[...], sum_c, preferred_element_type=jnp.float32) * inv_denom
    mean_c = jnp.dot(gmat_ref[...], mean_g, preferred_element_type=jnp.float32)   # (C, 1)

    # ---- stats pass 2: mean-subtracted variance (no E[x^2]-E[x]^2 cancellation) ----
    sq_c = jnp.zeros((c, 1), jnp.float32)
    for si in range(n_chunks):
        d = x_ref[0, :, si * t:(si + 1) * t] - mean_c
        sq_c = sq_c + jnp.dot(d * d, ones_t, preferred_element_type=jnp.float32)
    var_g = jnp.dot(gmat_t_ref[...], sq_c, preferred_element_type=jnp.float32) * inv_denom
    inv_c = jnp.dot(gmat_ref[...], lax.rsqrt(var_g + GN_EPS),
                    preferred_element_type=jnp.float32)                            # (C, 1)
    scale_c = gamma_ref[...] * inv_c
    shift_c = beta_ref[...] - mean_c * scale_c

    # ---- apply affine + QKV projection (bf16 MXU operands, f32 accumulation) ----
    w_qv = w_qv_ref[...]
    b_qv = b_qv_ref[...]
    wk_t = wk_t_ref[...]
    bk = bk_ref[...]
    for si in range(n_chunks):
        y = x_ref[0, :, si * t:(si + 1) * t] * scale_c + shift_c   # (C, t) f32
        y_bf = y.astype(jnp.bfloat16)                              # cast BEFORE transpose
        y_tok = y_bf.T                                             # (t, C) bf16
        # Q (pre-scaled by 1/sqrt(C)) and V token-major in one matmul
        qv = jnp.dot(y_tok, w_qv, preferred_element_type=jnp.float32) + b_qv      # (t, 2C)
        # K channel-major -> pass B score matmul is a natural (tq,C)@(C,tk) dot
        k_cm = jnp.dot(wk_t, y_bf, preferred_element_type=jnp.float32) + bk       # (C, t)
        q_ref[0, si * t:(si + 1) * t, :] = qv[:, :c].astype(q_ref.dtype)
        v_ref[0, si] = qv[:, c:].astype(v_ref.dtype)
        k_ref[0, si] = k_cm.astype(k_ref.dtype)


# --------------------------------------------------------------------------------------
# Pass B: flash attention with VMEM-resident K/V + out projection + residual
# --------------------------------------------------------------------------------------
def _flash_attn_kernel(q_ref, k_ref, v_ref, xres_ref, wo_t_ref, bo_ref, o_ref, *, n_kv):
    tq = q_ref.shape[1]
    c = q_ref.shape[2]
    q = q_ref[0]                                       # (tq, C) bf16, 1/sqrt(C) already folded

    def body(i, carry):
        m, l, acc = carry
        k = k_ref[0, i]                                # (C, tk) bf16 chunk of the resident slab
        v = v_ref[0, i]                                # (tk, C) bf16 chunk of the resident slab
        s = jnp.dot(q, k, preferred_element_type=jnp.float32)                 # (tq, tk) f32
        m_new = jnp.maximum(m, jnp.max(s, axis=-1, keepdims=True))
        alpha = jnp.exp(m - m_new)                     # f32 softmax math throughout
        p = jnp.exp(s - m_new)
        l_new = alpha * l + jnp.sum(p, axis=-1, keepdims=True)
        acc_new = alpha * acc + jnp.dot(p.astype(jnp.bfloat16), v,
                                        preferred_element_type=jnp.float32)
        return m_new, l_new, acc_new

    init = (jnp.full((tq, 1), -jnp.inf, jnp.float32),
            jnp.zeros((tq, 1), jnp.float32),
            jnp.zeros((tq, c), jnp.float32))
    _, l, acc = lax.fori_loop(0, n_kv, body, init, unroll=(n_kv <= 8))

    ctx = acc / l                                      # exact normalization, once per q tile
    # out projection emitted directly channel-major: (C, tq) = wo.T "@" ctx  (epilogue only)
    out_cs = lax.dot_general(wo_t_ref[...], ctx.astype(jnp.bfloat16), _TRANS_B,
                             preferred_element_type=jnp.float32)              # (C, tq)
    o_ref[0] = (xres_ref[0] + out_cs + bo_ref[...]).astype(o_ref.dtype)


# --------------------------------------------------------------------------------------
# Wrapper
# --------------------------------------------------------------------------------------
def vae_attention_block(x_nchw, params):
    """x_nchw: (N, C, H, W) float32. Returns (N, C, H, W)."""
    N, C, H, W = x_nchw.shape
    S = H * W
    G = NUM_GROUPS
    assert C % G == 0, "GroupNorm(32, C) requires C % 32 == 0"
    group_size = C // G

    vmem_limit = _vmem_limit_bytes()
    max_tile = 1024 if vmem_limit >= 96 * 1024 * 1024 else 512   # bigger tiles on 128-MiB parts
    t = _choose_tile(S, max_tile)
    n_chunks = S // t
    # TODO(synk): fall back to a streaming (non-resident) GroupNorm split when C*S*4B plus the
    # QKV outputs exceed the per-generation VMEM budget (only relevant for very large S).

    # channel-major token view; reshape of NCHW is free (no HBM transpose round trips)
    x_cs = x_nchw.reshape(N, C, S)

    # ---- host-side parameter packing (tiny, one-time) ----
    attn_scale = 1.0 / math.sqrt(C)                    # d_head == C for 1 head
    gamma_col = params["gn_gamma"].reshape(C, 1).astype(jnp.float32)
    beta_col = params["gn_beta"].reshape(C, 1).astype(jnp.float32)
    ch_ids = jnp.arange(C) // group_size
    gmat = jax.nn.one_hot(ch_ids, G, dtype=jnp.float32)    # (C, G) channel->group one-hot
    gmat_t = gmat.T                                        # (G, C) precomputed

    w_qv = jnp.concatenate([params["wq"] * attn_scale, params["wv"]],
                           axis=1).astype(jnp.bfloat16)                      # (C, 2C)
    b_qv = jnp.concatenate([params["bq"] * attn_scale, params["bv"]]
                           ).reshape(1, 2 * C).astype(jnp.float32)           # (1, 2C)
    wk_t = params["wk"].T.astype(jnp.bfloat16)                               # (C, C)
    bk_col = params["bk"].reshape(C, 1).astype(jnp.float32)
    wo_t = params["wo"].T.astype(jnp.bfloat16)
    bo_col = params["bo"].reshape(C, 1).astype(jnp.float32)

    # ---- Pass A: fused GroupNorm + QKV projection (x read from HBM once) ----
    q, k4, v4 = pl.pallas_call(
        functools.partial(_gn_qkv_kernel, t=t, n_chunks=n_chunks,
                          inv_denom=float(1.0 / (S * group_size))),
        out_shape=(jax.ShapeDtypeStruct((N, S, C), jnp.bfloat16),
                   jax.ShapeDtypeStruct((N, n_chunks, C, t), jnp.bfloat16),   # K channel-major
                   jax.ShapeDtypeStruct((N, n_chunks, t, C), jnp.bfloat16)),  # V token-major
        grid_spec=pltpu.PrefetchScalarGridSpec(
            num_scalar_prefetch=0,
            grid=(N,),
            in_specs=[
                pl.BlockSpec((1, C, S), lambda n: (n, 0, 0)),     # resident x slab
                pl.BlockSpec((C, 1), lambda n: (0, 0)),           # gamma
                pl.BlockSpec((C, 1), lambda n: (0, 0)),           # beta
                pl.BlockSpec((C, G), lambda n: (0, 0)),           # channel->group one-hot
                pl.BlockSpec((G, C), lambda n: (0, 0)),           # its transpose
                pl.BlockSpec((C, 2 * C), lambda n: (0, 0)),       # [wq*scale | wv] bf16
                pl.BlockSpec((1, 2 * C), lambda n: (0, 0)),       # [bq*scale | bv] f32
                pl.BlockSpec((C, C), lambda n: (0, 0)),           # wk.T bf16
                pl.BlockSpec((C, 1), lambda n: (0, 0)),           # bk column
            ],
            out_specs=[
                pl.BlockSpec((1, S, C), lambda n: (n, 0, 0)),
                pl.BlockSpec((1, n_chunks, C, t), lambda n: (n, 0, 0, 0)),
                pl.BlockSpec((1, n_chunks, t, C), lambda n: (n, 0, 0, 0)),
            ],
        ),
        compiler_params=pltpu.CompilerParams(
            dimension_semantics=("parallel",),
            vmem_limit_bytes=vmem_limit),
    )(x_cs, gamma_col, beta_col, gmat, gmat_t, w_qv, b_qv, wk_t, bk_col)

    # ---- Pass B: flash attention with resident K/V + out projection + residual ----
    o_cs = pl.pallas_call(
        functools.partial(_flash_attn_kernel, n_kv=n_chunks),
        out_shape=jax.ShapeDtypeStruct((N, C, S), x_nchw.dtype),
        grid_spec=pltpu.PrefetchScalarGridSpec(
            num_scalar_prefetch=0,
            grid=(N, n_chunks),
            in_specs=[
                pl.BlockSpec((1, t, C), lambda n, qi: (n, qi, 0)),               # q tile
                pl.BlockSpec((1, n_chunks, C, t), lambda n, qi: (n, 0, 0, 0)),   # K resident
                pl.BlockSpec((1, n_chunks, t, C), lambda n, qi: (n, 0, 0, 0)),   # V resident
                pl.BlockSpec((1, C, t), lambda n, qi: (n, 0, qi)),               # residual
                pl.BlockSpec((C, C), lambda n, qi: (0, 0)),                      # wo.T bf16
                pl.BlockSpec((C, 1), lambda n, qi: (0, 0)),                      # bo column
            ],
            out_specs=pl.BlockSpec((1, C, t), lambda n, qi: (n, 0, qi)),
        ),
        compiler_params=pltpu.CompilerParams(
            dimension_semantics=("parallel", "parallel"),
            vmem_limit_bytes=vmem_limit),
    )(q, k4, v4, x_cs, wo_t, bo_col)

    return o_cs.reshape(N, C, H, W)


# --------------------------------------------------------------------------------------
# Pure-JAX (f32) reference mirroring the PyTorch forward, for verification
# --------------------------------------------------------------------------------------
def vae_attention_block_ref(x_nchw, params):
    N, C, H, W = x_nchw.shape
    S = H * W
    x_tok = jnp.transpose(x_nchw.reshape(N, C, S), (0, 2, 1))  # (N, S, C)

    gs = C // NUM_GROUPS
    xg = x_tok.reshape(N, S, NUM_GROUPS, gs)
    mean = jnp.mean(xg, axis=(1, 3), keepdims=True)
    var = jnp.mean((xg - mean) ** 2, axis=(1, 3), keepdims=True)
    y = ((xg - mean) / jnp.sqrt(var + GN_EPS)).reshape(N, S, C)
    y = y * params["gn_gamma"][None, None, :] + params["gn_beta"][None, None, :]

    q = y @ params["wq"] + params["bq"]
    k = y @ params["wk"] + params["bk"]
    v = y @ params["wv"] + params["bv"]
    scores = (q @ jnp.swapaxes(k, -1, -2)) / math.sqrt(C)
    attn = jax.nn.softmax(scores, axis=-1)
    out = attn @ v
    out = out @ params["wo"] + params["bo"]

    out = x_tok + out
    return jnp.transpose(out, (0, 2, 1)).reshape(N, C, H, W)


def make_params(key, C):
    ks = jax.random.split(key, 10)
    scale = 0.05
    return {
        "gn_gamma": 1.0 + scale * jax.random.normal(ks[0], (C,), jnp.float32),
        "gn_beta": scale * jax.random.normal(ks[1], (C,), jnp.float32),
        "wq": scale * jax.random.normal(ks[2], (C, C), jnp.float32),
        "wk": scale * jax.random.normal(ks[3], (C, C), jnp.float32),
        "wv": scale * jax.random.normal(ks[4], (C, C), jnp.float32),
        "bq": scale * jax.random.normal(ks[5], (C,), jnp.float32),
        "bk": scale * jax.random.normal(ks[6], (C,), jnp.float32),
        "bv": scale * jax.random.normal(ks[7], (C,), jnp.float32),
        "wo": scale * jax.random.normal(ks[8], (C, C), jnp.float32),
        "bo": scale * jax.random.normal(ks[9], (C,), jnp.float32),
    }


if __name__ == "__main__":
    key = jax.random.PRNGKey(0)
    k_x, k_p = jax.random.split(key)

    # Small shapes: batch=2, channels=64 (multiple of 32 for GroupNorm(32, C)),
    # spatial 8x8 -> 64 tokens of dim 64.
    N, C, H, W = 2, 64, 8, 8
    x = jax.random.normal(k_x, (N, C, H, W), jnp.float32)
    params = make_params(k_p, C)

    out = jax.block_until_ready(vae_attention_block(x, params))
    ref = jax.block_until_ready(vae_attention_block_ref(x, params))

    assert out.shape == (N, C, H, W)
    # bf16 MXU operands (f32 accumulation) -> compare with a bf16-level tolerance vs f32 reference.
    max_err = float(jnp.max(jnp.abs(out - ref)))
    assert max_err < 2e-2, f"mismatch vs reference: {max_err}"
    print("KERNEL_OK")
</pallas_src>

<mosaic_0001>
module attributes {stable_mosaic.version = 11 : i64} {
  func.func @_gn_qkv_kernel(%arg0: i32, %arg1: memref<1x64x64xf32, #tpu.memory_space<vmem>>, %arg2: memref<64x1xf32, #tpu.memory_space<vmem>>, %arg3: memref<64x1xf32, #tpu.memory_space<vmem>>, %arg4: memref<64x32xf32, #tpu.memory_space<vmem>>, %arg5: memref<32x64xf32, #tpu.memory_space<vmem>>, %arg6: memref<64x128xbf16, #tpu.memory_space<vmem>>, %arg7: memref<1x128xf32, #tpu.memory_space<vmem>>, %arg8: memref<64x64xbf16, #tpu.memory_space<vmem>>, %arg9: memref<64x1xf32, #tpu.memory_space<vmem>>, %arg10: memref<1x64x64xbf16, #tpu.memory_space<vmem>>, %arg11: memref<1x1x64x64xbf16, #tpu.memory_space<vmem>>, %arg12: memref<1x1x64x64xbf16, #tpu.memory_space<vmem>>) attributes {dimension_semantics = [#tpu.dimension_semantics<parallel>], iteration_bounds = array<i64: 2>, scalar_prefetch = 0 : i64, scratch_operands = 0 : i64, tpu.core_type = #tpu.core_type<tc>, window_params = [{transform_indices = @transform_0, window_bounds = array<i64: 1, 64, 64>}, {pipeline_mode = #tpu.pipeline_mode<synchronous>, transform_indices = @transform_1, window_bounds = array<i64: 64, 1>}, {pipeline_mode = #tpu.pipeline_mode<synchronous>, transform_indices = @transform_2, window_bounds = array<i64: 64, 1>}, {pipeline_mode = #tpu.pipeline_mode<synchronous>, transform_indices = @transform_3, window_bounds = array<i64: 64, 32>}, {pipeline_mode = #tpu.pipeline_mode<synchronous>, transform_indices = @transform_4, window_bounds = array<i64: 32, 64>}, {pipeline_mode = #tpu.pipeline_mode<synchronous>, transform_indices = @transform_5, window_bounds = array<i64: 64, 128>}, {pipeline_mode = #tpu.pipeline_mode<synchronous>, transform_indices = @transform_6, window_bounds = array<i64: 1, 128>}, {pipeline_mode = #tpu.pipeline_mode<synchronous>, transform_indices = @transform_7, window_bounds = array<i64: 64, 64>}, {pipeline_mode = #tpu.pipeline_mode<synchronous>, transform_indices = @transform_8, window_bounds = array<i64: 64, 1>}, {transform_indices = @transform_9, window_bounds = array<i64: 1, 64, 64>}, {transform_indices = @transform_10, window_bounds = array<i64: 1, 1, 64, 64>}, {transform_indices = @transform_11, window_bounds = array<i64: 1, 1, 64, 64>}]} {
    %cst = arith.constant 1.000000e+00 : f32
    %0 = vector.broadcast %cst : f32 to vector<64x1xf32>
    %cst_0 = arith.constant 0.000000e+00 : f32
    %1 = vector.broadcast %cst_0 : f32 to vector<64x1xf32>
    %c0 = arith.constant 0 : index
    %c0_1 = arith.constant 0 : index
    %c0_2 = arith.constant 0 : index
    %2 = vector.load %arg1[%c0, %c0_1, %c0_2] : memref<1x64x64xf32, #tpu.memory_space<vmem>>, vector<1x64x64xf32>
    %3 = vector.shape_cast %2 : vector<1x64x64xf32> to vector<64x64xf32>
    %cst_3 = arith.constant dense<0.000000e+00> : vector<64x1xf32>
    %4 = tpu.matmul %3, %0, %cst_3 {dimension_numbers = #tpu.dot_dimension_numbers<[1], [0], [0], [1], [0, 0, 1, 1], [], []>} : vector<64x64xf32>, vector<64x1xf32>, vector<64x1xf32> -> vector<64x1xf32>
    %5 = arith.addf %1, %4 : vector<64x1xf32>
    %c0_4 = arith.constant 0 : index
    %c0_5 = arith.constant 0 : index
    %6 = vector.load %arg5[%c0_4, %c0_5] : memref<32x64xf32, #tpu.memory_space<vmem>>, vector<32x64xf32>
    %cst_6 = arith.constant dense<0.000000e+00> : vector<32x1xf32>
    %7 = tpu.matmul %6, %5, %cst_6 {dimension_numbers = #tpu.dot_dimension_numbers<[1], [0], [0], [1], [0, 0, 1, 1], [], []>} : vector<32x64xf32>, vector<64x1xf32>, vector<32x1xf32> -> vector<32x1xf32>
    %cst_7 = arith.constant 7.812500e-03 : f32
    %8 = vector.broadcast %cst_7 : f32 to vector<32x1xf32>
    %9 = arith.mulf %7, %8 : vector<32x1xf32>
    %c0_8 = arith.constant 0 : index
    %c0_9 = arith.constant 0 : index
    %10 = vector.load %arg4[%c0_8, %c0_9] : memref<64x32xf32, #tpu.memory_space<vmem>>, vector<64x32xf32>
    %cst_10 = arith.constant dense<0.000000e+00> : vector<64x1xf32>
    %11 = tpu.matmul %10, %9, %cst_10 {dimension_numbers = #tpu.dot_dimension_numbers<[1], [0], [0], [1], [0, 0, 1, 1], [], []>} : vector<64x32xf32>, vector<32x1xf32>, vector<64x1xf32> -> vector<64x1xf32>
    %cst_11 = arith.constant 0.000000e+00 : f32
    %12 = vector.broadcast %cst_11 : f32 to vector<64x1xf32>
    %c0_12 = arith.constant 0 : index
    %c0_13 = arith.constant 0 : index
    %c0_14 = arith.constant 0 : index
    %13 = vector.load %arg1[%c0_12, %c0_13, %c0_14] : memref<1x64x64xf32, #tpu.memory_space<vmem>>, vector<1x64x64xf32>
    %14 = vector.shape_cast %13 : vector<1x64x64xf32> to vector<64x64xf32>
    %15 = vector.broadcast %11 : vector<64x1xf32> to vector<64x64xf32>
    %16 = arith.subf %14, %15 : vector<64x64xf32>
    %17 = arith.mulf %16, %16 : vector<64x64xf32>
    %cst_15 = arith.constant dense<0.000000e+00> : vector<64x1xf32>
    %18 = tpu.matmul %17, %0, %cst_15 {dimension_numbers = #tpu.dot_dimension_numbers<[1], [0], [0], [1], [0, 0, 1, 1], [], []>} : vector<64x64xf32>, vector<64x1xf32>, vector<64x1xf32> -> vector<64x1xf32>
    %19 = arith.addf %12, %18 : vector<64x1xf32>
    %c0_16 = arith.constant 0 : index
    %c0_17 = arith.constant 0 : index
    %20 = vector.load %arg5[%c0_16, %c0_17] : memref<32x64xf32, #tpu.memory_space<vmem>>, vector<32x64xf32>
    %cst_18 = arith.constant dense<0.000000e+00> : vector<32x1xf32>
    %21 = tpu.matmul %20, %19, %cst_18 {dimension_numbers = #tpu.dot_dimension_numbers<[1], [0], [0], [1], [0, 0, 1, 1], [], []>} : vector<32x64xf32>, vector<64x1xf32>, vector<32x1xf32> -> vector<32x1xf32>
    %cst_19 = arith.constant 7.812500e-03 : f32
    %22 = vector.broadcast %cst_19 : f32 to vector<32x1xf32>
    %23 = arith.mulf %21, %22 : vector<32x1xf32>
    %c0_20 = arith.constant 0 : index
    %c0_21 = arith.constant 0 : index
    %24 = vector.load %arg4[%c0_20, %c0_21] : memref<64x32xf32, #tpu.memory_space<vmem>>, vector<64x32xf32>
    %cst_22 = arith.constant 9.99999974E-6 : f32
    %25 = vector.broadcast %cst_22 : f32 to vector<32x1xf32>
    %26 = arith.addf %23, %25 : vector<32x1xf32>
    %27 = math.rsqrt %26 : vector<32x1xf32>
    %cst_23 = arith.constant dense<0.000000e+00> : vector<64x1xf32>
    %28 = tpu.matmul %24, %27, %cst_23 {dimension_numbers = #tpu.dot_dimension_numbers<[1], [0], [0], [1], [0, 0, 1, 1], [], []>} : vector<64x32xf32>, vector<32x1xf32>, vector<64x1xf32> -> vector<64x1xf32>
    %c0_24 = arith.constant 0 : index
    %c0_25 = arith.constant 0 : index
    %29 = vector.load %arg2[%c0_24, %c0_25] : memref<64x1xf32, #tpu.memory_space<vmem>>, vector<64x1xf32>
    %30 = arith.mulf %29, %28 : vector<64x1xf32>
    %c0_26 = arith.constant 0 : index
    %c0_27 = arith.constant 0 : index
    %31 = vector.load %arg3[%c0_26, %c0_27] : memref<64x1xf32, #tpu.memory_space<vmem>>, vector<64x1xf32>
    %32 = arith.mulf %11, %30 : vector<64x1xf32>
    %33 = arith.subf %31, %32 : vector<64x1xf32>
    %c0_28 = arith.constant 0 : index
    %c0_29 = arith.constant 0 : index
    %34 = vector.load %arg6[%c0_28, %c0_29] : memref<64x128xbf16, #tpu.memory_space<vmem>>, vector<64x128xbf16>
    %c0_30 = arith.constant 0 : index
    %c0_31 = arith.constant 0 : index
    %35 = vector.load %arg7[%c0_30, %c0_31] : memref<1x128xf32, #tpu.memory_space<vmem>>, vector<1x128xf32>
    %c0_32 = arith.constant 0 : index
    %c0_33 = arith.constant 0 : index
    %36 = vector.load %arg8[%c0_32, %c0_33] : memref<64x64xbf16, #tpu.memory_space<vmem>>, vector<64x64xbf16>
    %c0_34 = arith.constant 0 : index
    %c0_35 = arith.constant 0 : index
    %37 = vector.load %arg9[%c0_34, %c0_35] : memref<64x1xf32, #tpu.memory_space<vmem>>, vector<64x1xf32>
    %c0_36 = arith.constant 0 : index
    %c0_37 = arith.constant 0 : index
    %c0_38 = arith.constant 0 : index
    %38 = vector.load %arg1[%c0_36, %c0_37, %c0_38] : memref<1x64x64xf32, #tpu.memory_space<vmem>>, vector<1x64x64xf32>
    %39 = vector.shape_cast %38 : vector<1x64x64xf32> to vector<64x64xf32>
    %40 = vector.broadcast %30 : vector<64x1xf32> to vector<64x64xf32>
    %41 = arith.mulf %39, %40 : vector<64x64xf32>
    %42 = vector.broadcast %33 : vector<64x1xf32> to vector<64x64xf32>
    %43 = arith.addf %41, %42 : vector<64x64xf32>
    %44 = arith.truncf %43 : vector<64x64xf32> to vector<64x64xbf16>
    %45 = tpu.transpose %44, [1, 0] : vector<64x64xbf16> -> vector<64x64xbf16>
    %cst_39 = arith.constant dense<0.000000e+00> : vector<64x128xf32>
    %46 = tpu.matmul %45, %34, %cst_39 {dimension_numbers = #tpu.dot_dimension_numbers<[1], [0], [0], [1], [0, 0, 1, 1], [], []>} : vector<64x64xbf16>, vector<64x128xbf16>, vector<64x128xf32> -> vector<64x128xf32>
    %47 = vector.broadcast %35 : vector<1x128xf32> to vector<64x128xf32>
    %48 = arith.addf %46, %47 : vector<64x128xf32>
    %cst_40 = arith.constant dense<0.000000e+00> : vector<64x64xf32>
    %49 = tpu.matmul %36, %44, %cst_40 {dimension_numbers = #tpu.dot_dimension_numbers<[1], [0], [0], [1], [0, 0, 1, 1], [], []>} : vector<64x64xbf16>, vector<64x64xbf16>, vector<64x64xf32> -> vector<64x64xf32>
    %50 = vector.broadcast %37 : vector<64x1xf32> to vector<64x64xf32>
    %51 = arith.addf %49, %50 : vector<64x64xf32>
    %52 = vector.extract_strided_slice %48 {offsets = [0, 0], sizes = [64, 64], strides = [1, 1]} : vector<64x128xf32> to vector<64x64xf32>
    %53 = arith.truncf %52 : vector<64x64xf32> to vector<64x64xbf16>
    %c0_41 = arith.constant 0 : index
    %c0_42 = arith.constant 0 : index
    %c0_43 = arith.constant 0 : index
    %54 = vector.load %arg10[%c0_41, %c0_42, %c0_43] : memref<1x64x64xbf16, #tpu.memory_space<vmem>>, vector<1x64x64xbf16>
    %55 = vector.shape_cast %54 : vector<1x64x64xbf16> to vector<64x64xbf16>
    %56 = vector.shape_cast %53 : vector<64x64xbf16> to vector<1x64x64xbf16>
    tpu.vector_store %arg10[%c0_41, %c0_42, %c0_43], %56 {strides = array<i32>} : memref<1x64x64xbf16, #tpu.memory_space<vmem>>, vector<1x64x64xbf16>,
    %57 = vector.extract_strided_slice %48 {offsets = [0, 64], sizes = [64, 64], strides = [1, 1]} : vector<64x128xf32> to vector<64x64xf32>
    %58 = arith.truncf %57 : vector<64x64xf32> to vector<64x64xbf16>
    %c0_44 = arith.constant 0 : index
    %c0_45 = arith.constant 0 : index
    %c0_46 = arith.constant 0 : index
    %c0_47 = arith.constant 0 : index
    %59 = vector.load %arg12[%c0_44, %c0_45, %c0_46, %c0_47] : memref<1x1x64x64xbf16, #tpu.memory_space<vmem>>, vector<1x1x64x64xbf16>
    %60 = vector.shape_cast %59 : vector<1x1x64x64xbf16> to vector<64x64xbf16>
    %61 = vector.shape_cast %58 : vector<64x64xbf16> to vector<1x1x64x64xbf16>
    tpu.vector_store %arg12[%c0_44, %c0_45, %c0_46, %c0_47], %61 {strides = array<i32>} : memref<1x1x64x64xbf16, #tpu.memory_space<vmem>>, vector<1x1x64x64xbf16>,
    %62 = arith.truncf %51 : vector<64x64xf32> to vector<64x64xbf16>
    %c0_48 = arith.constant 0 : index
    %c0_49 = arith.constant 0 : index
    %c0_50 = arith.constant 0 : index
    %c0_51 = arith.constant 0 : index
    %63 = vector.load %arg11[%c0_48, %c0_49, %c0_50, %c0_51] : memref<1x1x64x64xbf16, #tpu.memory_space<vmem>>, vector<1x1x64x64xbf16>
    %64 = vector.shape_cast %63 : vector<1x1x64x64xbf16> to vector<64x64xbf16>
    %65 = vector.shape_cast %62 : vector<64x64xbf16> to vector<1x1x64x64xbf16>
    tpu.vector_store %arg11[%c0_48, %c0_49, %c0_50, %c0_51], %65 {strides = array<i32>} : memref<1x1x64x64xbf16, #tpu.memory_space<vmem>>, vector<1x1x64x64xbf16>,
    return
  }
  func.func @transform_0(%arg0: i32) -> (i32, i32, i32) {
    %c0_i32 = arith.constant 0 : i32
    %c0_i32_0 = arith.constant 0 : i32
    %c0_i32_1 = arith.constant 0 : i32
    return %arg0, %c0_i32, %c0_i32_0 : i32, i32, i32
  }
  func.func @transform_1(%arg0: i32) -> (i32, i32) {
    %c0_i32 = arith.constant 0 : i32
    %c0_i32_0 = arith.constant 0 : i32
    %c0_i32_1 = arith.constant 0 : i32
    return %c0_i32, %c0_i32_0 : i32, i32
  }
  func.func @transform_2(%arg0: i32) -> (i32, i32) {
    %c0_i32 = arith.constant 0 : i32
    %c0_i32_0 = arith.constant 0 : i32
    %c0_i32_1 = arith.constant 0 : i32
    return %c0_i32, %c0_i32_0 : i32, i32
  }
  func.func @transform_3(%arg0: i32) -> (i32, i32) {
    %c0_i32 = arith.constant 0 : i32
    %c0_i32_0 = arith.constant 0 : i32
    %c0_i32_1 = arith.constant 0 : i32
    return %c0_i32, %c0_i32_0 : i32, i32
  }
  func.func @transform_4(%arg0: i32) -> (i32, i32) {
    %c0_i32 = arith.constant 0 : i32
    %c0_i32_0 = arith.constant 0 : i32
    %c0_i32_1 = arith.constant 0 : i32
    return %c0_i32, %c0_i32_0 : i32, i32
  }
  func.func @transform_5(%arg0: i32) -> (i32, i32) {
    %c0_i32 = arith.constant 0 : i32
    %c0_i32_0 = arith.constant 0 : i32
    %c0_i32_1 = arith.constant 0 : i32
    return %c0_i32, %c0_i32_0 : i32, i32
  }
  func.func @transform_6(%arg0: i32) -> (i32, i32) {
    %c0_i32 = arith.constant 0 : i32
    %c0_i32_0 = arith.constant 0 : i32
    %c0_i32_1 = arith.constant 0 : i32
    return %c0_i32, %c0_i32_0 : i32, i32
  }
  func.func @transform_7(%arg0: i32) -> (i32, i32) {
    %c0_i32 = arith.constant 0 : i32
    %c0_i32_0 = arith.constant 0 : i32
    %c0_i32_1 = arith.constant 0 : i32
    return %c0_i32, %c0_i32_0 : i32, i32
  }
  func.func @transform_8(%arg0: i32) -> (i32, i32) {
    %c0_i32 = arith.constant 0 : i32
    %c0_i32_0 = arith.constant 0 : i32
    %c0_i32_1 = arith.constant 0 : i32
    return %c0_i32, %c0_i32_0 : i32, i32
  }
  func.func @transform_9(%arg0: i32) -> (i32, i32, i32) {
    %c0_i32 = arith.constant 0 : i32
    %c0_i32_0 = arith.constant 0 : i32
    %c0_i32_1 = arith.constant 0 : i32
    return %arg0, %c0_i32, %c0_i32_0 : i32, i32, i32
  }
  func.func @transform_10(%arg0: i32) -> (i32, i32, i32, i32) {
    %c0_i32 = arith.constant 0 : i32
    %c0_i32_0 = arith.constant 0 : i32
    %c0_i32_1 = arith.constant 0 : i32
    %c0_i32_2 = arith.constant 0 : i32
    return %arg0, %c0_i32, %c0_i32_0, %c0_i32_1 : i32, i32, i32, i32
  }
  func.func @transform_11(%arg0: i32) -> (i32, i32, i32, i32) {
    %c0_i32 = arith.constant 0 : i32
    %c0_i32_0 = arith.constant 0 : i32
    %c0_i32_1 = arith.constant 0 : i32
    %c0_i32_2 = arith.constant 0 : i32
    return %arg0, %c0_i32, %c0_i32_0, %c0_i32_1 : i32, i32, i32, i32
  }
}

</mosaic_0001>

<llo_original>
// kernel: tpu_custom_call.1
$region0: #{tpu_custom_call.1}
  #allocation0 [shape = 'u32[]', space=smem, size = 0x4, offset = 0x4, fixed_abs, tag = 'smem constant byte address 0x4 - core index']
  #allocation1 [shape = 'u32[144,128]{1,0:T(1,128)}', space=vmem, size = 0x12000, scoped, tag = 'internal scratch']
  %s0 = inlined_call_operand.vmem [shape: f32[2,64,64], index: 0, kind: input, shape index: {}]
  %s1 = inlined_call_operand.vmem [shape: f32[64,1], index: 1, kind: input, shape index: {}]
  %s2 = inlined_call_operand.vmem [shape: f32[64,1], index: 2, kind: input, shape index: {}]
  %s3 = inlined_call_operand.vmem [shape: f32[64,32], index: 3, kind: input, shape index: {}]
  %s4 = inlined_call_operand.vmem [shape: f32[32,64], index: 4, kind: input, shape index: {}]
  %s5 = inlined_call_operand.vmem [shape: bf16[64,128], index: 5, kind: input, shape index: {}]
  %s6 = inlined_call_operand.vmem [shape: f32[1,128], index: 6, kind: input, shape index: {}]
  %s7 = inlined_call_operand.vmem [shape: bf16[64,64], index: 7, kind: input, shape index: {}]
  %s8 = inlined_call_operand.vmem [shape: f32[64,1], index: 8, kind: input, shape index: {}]
  %s9 = inlined_call_operand.hbm [shape: bf16[2,64,64], index: 9, kind: output, shape index: {0}]
  %s10 = inlined_call_operand.hbm [shape: bf16[2,1,64,64], index: 10, kind: output, shape index: {1}]
  %s11 = inlined_call_operand.hbm [shape: bf16[2,1,64,64], index: 11, kind: output, shape index: {2}]
  %12 = xla_tuple %s9, %s10, %s11
  %s13 = sld [smem:[#allocation0]]
  $region85: #{tpu_custom_call.1} parent=0
    _
  %s15 = ssub.s32 1, %s13
  %s16 = scalar_select 0, %s15, %s13
  $region1: #{tpu_custom_call.1} parent=0
    #allocation2 [shape = 'u8[32768]{0}', space=vmem, size = 0x8000, scoped, tag = 'output window, operand 0']
    #allocation3 [shape = 's32[2]{0}', space=sflag, size = 0x8, scoped, tag = 'scoped memory for tpu_custom_call.1']
    #allocation4 [shape = 'u8[32768]{0}', space=vmem, size = 0x8000, scoped, tag = 'output window, operand 1']
    #allocation5 [shape = 's32[2]{0}', space=sflag, size = 0x8, scoped, tag = 'scoped memory for tpu_custom_call.1']
    #allocation6 [shape = 'u8[32768]{0}', space=vmem, size = 0x8000, scoped, tag = 'output window, operand 2']
    %17 = vsyncpa [#allocation3], 0
    %s18 = scalar_lea.sflag [#allocation3], 1
    %19 = vsyncpa %s18, 0
    %20 = vsyncpa [#allocation5], 0
    %s21 = scalar_lea.sflag [#allocation5], 1
    %22 = vsyncpa %s21, 0
    loop: start=0, step=1, limit=4
    $region2: #{tpu_custom_call.1} parent=1 // loop_pre_header
      _
    $region3: #{tpu_custom_call.1} parent=1 // loop_header
      %s24 = sphi 0, %s28
      %p25 = scmp.ge.s32.totalorder %s24, 4
      %s34 = sphi 0, %s36
      %s37 = sphi 0, %s34
      %s38 = sphi 0, %s37
      %s54 = sphi 0, %s38
      %s58 = sphi 0, %s58
      %s60 = sphi 0, %s58
      %s61 = sphi 0, %s60
      %s75 = sphi 0, %s61
      %s79 = sphi 0, %s79
      %s81 = sphi 0, %s79
      %s82 = sphi 0, %s81
      %s96 = sphi 0, %s82
      %s100 = sphi 0, %s100
      %s102 = sphi 0, %s100
      %s103 = sphi 0, %s102
      %s117 = sphi 0, %s103
      %s121 = sphi 0, %s121
      %s123 = sphi 0, %s121
      %s124 = sphi 0, %s123
      %s138 = sphi 0, %s124
      %s142 = sphi 0, %s142
      %s144 = sphi 0, %s142
      %s145 = sphi 0, %s144
      %s159 = sphi 0, %s145
      %s163 = sphi 0, %s163
      %s165 = sphi 0, %s163
      %s166 = sphi 0, %s165
      %s180 = sphi 0, %s166
      %s184 = sphi 0, %s184
      %s186 = sphi 0, %s184
      %s187 = sphi 0, %s186
      %s201 = sphi 0, %s187
      %s205 = sphi 0, %s205
      %s207 = sphi 0, %s205
      %s208 = sphi 0, %s207
      %s222 = sphi 0, %s208
      %s228 = sphi 0, %s230
      %s231 = sphi 0, %s228
      %s232 = sphi 0, %s231
      %s248 = sphi 0, %s232
      %s254 = sphi 0, %s256
      %s257 = sphi 0, %s254
      %s258 = sphi 0, %s257
      %s274 = sphi 0, %s258
      %s280 = sphi 0, %s282
      %s283 = sphi 0, %s280
      %s284 = sphi 0, %s283
      %s300 = sphi 0, %s284
    $region4: #{tpu_custom_call.1} parent=1 // loop_header_branch
      %27 = sbr.rel (%p25) target = $region8
    $region5: #{tpu_custom_call.1} parent=1 // loop_body
      %s29 = ssub.s32 %s24, 1
      %s30 = ssub.s32 %s24, 2
      %s31 = sadd.s32 %s24, 1
      %s32 = ssub.s32 %s24, %s31
      %p33 = scmp.eq.s32.totalorder %s32, 0
      %s35 = sadd.s32 %s34, 1
      %s36 = scalar_select %p33, %s34, %s35
      %p39 = pneg %p33
      %p40 = scmp.eq.s32.totalorder %s24, 1
      %p41 = por %p39, %p40
      %p42 = scmp.ne.s32.totalorder %s34, %s37
      %p43 = scmp.eq.s32.totalorder %s24, 0
      %p44 = por %p42, %p43
      %p45 = scmp.ne.s32.totalorder %s34, %s37
      %p46 = scmp.eq.s32.totalorder %s29, 1
      %p47 = por %p45, %p46
      %p48 = scmp.ne.s32.totalorder %s37, %s38
      %p49 = scmp.eq.s32.totalorder %s29, 0
      %p50 = por %p48, %p49
      %p51 = scmp.ne.s32.totalorder %s37, %s38
      %p52 = scmp.eq.s32.totalorder %s30, 1
      %p53 = por %p51, %p52
      %p55 = scmp.ne.s32.totalorder %s38, %s54
      %p56 = scmp.eq.s32.totalorder %s30, 0
      %p57 = por %p55, %p56
      %s59 = sadd.s32 %s58, 1
      %p62 = scmp.eq.s32.totalorder %s24, 1
      %p63 = scmp.ne.s32.totalorder %s58, %s60
      %p64 = scmp.eq.s32.totalorder %s24, 0
      %p65 = por %p63, %p64
      %p66 = scmp.ne.s32.totalorder %s58, %s60
      %p67 = scmp.eq.s32.totalorder %s29, 1
      %p68 = por %p66, %p67
      %p69 = scmp.ne.s32.totalorder %s60, %s61
      %p70 = scmp.eq.s32.totalorder %s29, 0
      %p71 = por %p69, %p70
      %p72 = scmp.ne.s32.totalorder %s60, %s61
      %p73 = scmp.eq.s32.totalorder %s30, 1
      %p74 = por %p72, %p73
      %p76 = scmp.ne.s32.totalorder %s61, %s75
      %p77 = scmp.eq.s32.totalorder %s30, 0
      %p78 = por %p76, %p77
      %s80 = sadd.s32 %s79, 1
      %p83 = scmp.eq.s32.totalorder %s24, 1
      %p84 = scmp.ne.s32.totalorder %s79, %s81
      %p85 = scmp.eq.s32.totalorder %s24, 0
      %p86 = por %p84, %p85
      %p87 = scmp.ne.s32.totalorder %s79, %s81
      %p88 = scmp.eq.s32.totalorder %s29, 1
      %p89 = por %p87, %p88
      %p90 = scmp.ne.s32.totalorder %s81, %s82
      %p91 = scmp.eq.s32.totalorder %s29, 0
      %p92 = por %p90, %p91
      %p93 = scmp.ne.s32.totalorder %s81, %s82
      %p94 = scmp.eq.s32.totalorder %s30, 1
      %p95 = por %p93, %p94
      %p97 = scmp.ne.s32.totalorder %s82, %s96
      %p98 = scmp.eq.s32.totalorder %s30, 0
      %p99 = por %p97, %p98
      %s101 = sadd.s32 %s100, 1
      %p104 = scmp.eq.s32.totalorder %s24, 1
      %p105 = scmp.ne.s32.totalorder %s100, %s102
      %p106 = scmp.eq.s32.totalorder %s24, 0
      %p107 = por %p105, %p106
      %p108 = scmp.ne.s32.totalorder %s100, %s102
      %p109 = scmp.eq.s32.totalorder %s29, 1
      %p110 = por %p108, %p109
      %p111 = scmp.ne.s32.totalorder %s102, %s103
      %p112 = scmp.eq.s32.totalorder %s29, 0
      %p113 = por %p111, %p112
      %p114 = scmp.ne.s32.totalorder %s102, %s103
      %p115 = scmp.eq.s32.totalorder %s30, 1
      %p116 = por %p114, %p115
      %p118 = scmp.ne.s32.totalorder %s103, %s117
      %p119 = scmp.eq.s32.totalorder %s30, 0
      %p120 = por %p118, %p119
      %s122 = sadd.s32 %s121, 1
      %p125 = scmp.eq.s32.totalorder %s24, 1
      %p126 = scmp.ne.s32.totalorder %s121, %s123
      %p127 = scmp.eq.s32.totalorder %s24, 0
      %p128 = por %p126, %p127
      %p129 = scmp.ne.s32.totalorder %s121, %s123
      %p130 = scmp.eq.s32.totalorder %s29, 1
      %p131 = por %p129, %p130
      %p132 = scmp.ne.s32.totalorder %s123, %s124
      %p133 = scmp.eq.s32.totalorder %s29, 0
      %p134 = por %p132, %p133
      %p135 = scmp.ne.s32.totalorder %s123, %s124
      %p136 = scmp.eq.s32.totalorder %s30, 1
      %p137 = por %p135, %p136
      %p139 = scmp.ne.s32.totalorder %s124, %s138
      %p140 = scmp.eq.s32.totalorder %s30, 0
      %p141 = por %p139, %p140
      %s143 = sadd.s32 %s142, 1
      %p146 = scmp.eq.s32.totalorder %s24, 1
      %p147 = scmp.ne.s32.totalorder %s142, %s144
      %p148 = scmp.eq.s32.totalorder %s24, 0
      %p149 = por %p147, %p148
      %p150 = scmp.ne.s32.totalorder %s142, %s144
      %p151 = scmp.eq.s32.totalorder %s29, 1
      %p152 = por %p150, %p151
      %p153 = scmp.ne.s32.totalorder %s144, %s145
      %p154 = scmp.eq.s32.totalorder %s29, 0
      %p155 = por %p153, %p154
      %p156 = scmp.ne.s32.totalorder %s144, %s145
      %p157 = scmp.eq.s32.totalorder %s30, 1
      %p158 = por %p156, %p157
      %p160 = scmp.ne.s32.totalorder %s145, %s159
      %p161 = scmp.eq.s32.totalorder %s30, 0
      %p162 = por %p160, %p161
      %s164 = sadd.s32 %s163, 1
      %p167 = scmp.eq.s32.totalorder %s24, 1
      %p168 = scmp.ne.s32.totalorder %s163, %s165
      %p169 = scmp.eq.s32.totalorder %s24, 0
      %p170 = por %p168, %p169
      %p171 = scmp.ne.s32.totalorder %s163, %s165
      %p172 = scmp.eq.s32.totalorder %s29, 1
      %p173 = por %p171, %p172
      %p174 = scmp.ne.s32.totalorder %s165, %s166
      %p175 = scmp.eq.s32.totalorder %s29, 0
      %p176 = por %p174, %p175
      %p177 = scmp.ne.s32.totalorder %s165, %s166
      %p178 = scmp.eq.s32.totalorder %s30, 1
      %p179 = por %p177, %p178
      %p181 = scmp.ne.s32.totalorder %s166, %s180
      %p182 = scmp.eq.s32.totalorder %s30, 0
      %p183 = por %p181, %p182
      %s185 = sadd.s32 %s184, 1
      %p188 = scmp.eq.s32.totalorder %s24, 1
      %p189 = scmp.ne.s32.totalorder %s184, %s186
      %p190 = scmp.eq.s32.totalorder %s24, 0
      %p191 = por %p189, %p190
      %p192 = scmp.ne.s32.totalorder %s184, %s186
      %p193 = scmp.eq.s32.totalorder %s29, 1
      %p194 = por %p192, %p193
      %p195 = scmp.ne.s32.totalorder %s186, %s187
      %p196 = scmp.eq.s32.totalorder %s29, 0
      %p197 = por %p195, %p196
      %p198 = scmp.ne.s32.totalorder %s186, %s187
      %p199 = scmp.eq.s32.totalorder %s30, 1
      %p200 = por %p198, %p199
      %p202 = scmp.ne.s32.totalorder %s187, %s201
      %p203 = scmp.eq.s32.totalorder %s30, 0
      %p204 = por %p202, %p203
      %s206 = sadd.s32 %s205, 1
      %p209 = scmp.eq.s32.totalorder %s24, 1
      %p210 = scmp.ne.s32.totalorder %s205, %s207
      %p211 = scmp.eq.s32.totalorder %s24, 0
      %p212 = por %p210, %p211
      %p213 = scmp.ne.s32.totalorder %s205, %s207
      %p214 = scmp.eq.s32.totalorder %s29, 1
      %p215 = por %p213, %p214
      %p216 = scmp.ne.s32.totalorder %s207, %s208
      %p217 = scmp.eq.s32.totalorder %s29, 0
      %p218 = por %p216, %p217
      %p219 = scmp.ne.s32.totalorder %s207, %s208
      %p220 = scmp.eq.s32.totalorder %s30, 1
      %p221 = por %p219, %p220
      %p223 = scmp.ne.s32.totalorder %s208, %s222
      %p224 = scmp.eq.s32.totalorder %s30, 0
      %p225 = por %p223, %p224
      %s226 = ssub.s32 %s24, %s31
      %p227 = scmp.eq.s32.totalorder %s226, 0
      %s229 = sadd.s32 %s228, 1
      %s230 = scalar_select %p227, %s228, %s229
      %p233 = pneg %p227
      %p234 = scmp.eq.s32.totalorder %s24, 1
      %p235 = por %p233, %p234
      %p236 = scmp.ne.s32.totalorder %s228, %s231
      %p237 = scmp.eq.s32.totalorder %s24, 0
      %p238 = por %p236, %p237
      %p239 = scmp.ne.s32.totalorder %s228, %s231
      %p240 = scmp.eq.s32.totalorder %s29, 1
      %p241 = por %p239, %p240
      %p242 = scmp.ne.s32.totalorder %s231, %s232
      %p243 = scmp.eq.s32.totalorder %s29, 0
      %p244 = por %p242, %p243
      %p245 = scmp.ne.s32.totalorder %s231, %s232
      %p246 = scmp.eq.s32.totalorder %s30, 1
      %p247 = por %p245, %p246
      %p249 = scmp.ne.s32.totalorder %s232, %s248
      %p250 = scmp.eq.s32.totalorder %s30, 0
      %p251 = por %p249, %p250
      %s252 = ssub.s32 %s24, %s31
      %p253 = scmp.eq.s32.totalorder %s252, 0
      %s255 = sadd.s32 %s254, 1
      %s256 = scalar_select %p253, %s254, %s255
      %p259 = pneg %p253
      %p260 = scmp.eq.s32.totalorder %s24, 1
      %p261 = por %p259, %p260
      %p262 = scmp.ne.s32.totalorder %s254, %s257
      %p263 = scmp.eq.s32.totalorder %s24, 0
      %p264 = por %p262, %p263
      %p265 = scmp.ne.s32.totalorder %s254, %s257
      %p266 = scmp.eq.s32.totalorder %s29, 1
      %p267 = por %p265, %p266
      %p268 = scmp.ne.s32.totalorder %s257, %s258
      %p269 = scmp.eq.s32.totalorder %s29, 0
      %p270 = por %p268, %p269
      %p271 = scmp.ne.s32.totalorder %s257, %s258
      %p272 = scmp.eq.s32.totalorder %s30, 1
      %p273 = por %p271, %p272
      %p275 = scmp.ne.s32.totalorder %s258, %s274
      %p276 = scmp.eq.s32.totalorder %s30, 0
      %p277 = por %p275, %p276
      %s278 = ssub.s32 %s24, %s31
      %p279 = scmp.eq.s32.totalorder %s278, 0
      %s281 = sadd.s32 %s280, 1
      %s282 = scalar_select %p279, %s280, %s281
      %p285 = pneg %p279
      %p286 = scmp.eq.s32.totalorder %s24, 1
      %p287 = por %p285, %p286
      %p288 = scmp.ne.s32.totalorder %s280, %s283
      %p289 = scmp.eq.s32.totalorder %s24, 0
      %p290 = por %p288, %p289
      %p291 = scmp.ne.s32.totalorder %s280, %s283
      %p292 = scmp.eq.s32.totalorder %s29, 1
      %p293 = por %p291, %p292
      %p294 = scmp.ne.s32.totalorder %s283, %s284
      %p295 = scmp.eq.s32.totalorder %s29, 0
      %p296 = por %p294, %p295
      %p297 = scmp.ne.s32.totalorder %s283, %s284
      %p298 = scmp.eq.s32.totalorder %s30, 1
      %p299 = por %p297, %p298
      %p301 = scmp.ne.s32.totalorder %s284, %s300
      %p302 = scmp.eq.s32.totalorder %s30, 0
      %p303 = por %p301, %p302
      %p304 = scmp.le.s32.totalorder 1, %s24
      %p305 = scmp.lt.s32.totalorder %s24, 3
      %p306 = pnand %p304, %p305
      %p307 = pneg %p306
      // Predicated region
      $region9: #{tpu_custom_call.1} parent=5 // pred_check
        _
      $region10: #{tpu_custom_call.1} parent=5 // pred_check_branch
        %309 = sbr.rel (%p306) target = $region12
      $region11: #{tpu_custom_call.1} parent=5 // pred_region
        %s310 = ssub.s32 %s24, 1
        // Predicated region
        $region13: #{tpu_custom_call.1} parent=11 // pred_check
          %p311 = pneg %p71
        $region14: #{tpu_custom_call.1} parent=11 // pred_check_branch
          %313 = sbr.rel (%p311) target = $region16
        $region15: #{tpu_custom_call.1} parent=11 // pred_region
          _
        $region16: #{tpu_custom_call.1} parent=11 // pred_fallthru
          _
        // Predicated region
        $region17: #{tpu_custom_call.1} parent=11 // pred_check
          %p314 = pneg %p92
        $region18: #{tpu_custom_call.1} parent=11 // pred_check_branch
          %316 = sbr.rel (%p314) target = $region20
        $region19: #{tpu_custom_call.1} parent=11 // pred_region
          _
        $region20: #{tpu_custom_call.1} parent=11 // pred_fallthru
          _
        // Predicated region
        $region21: #{tpu_custom_call.1} parent=11 // pred_check
          %p317 = pneg %p113
        $region22: #{tpu_custom_call.1} parent=11 // pred_check_branch
          %319 = sbr.rel (%p317) target = $region24
        $region23: #{tpu_custom_call.1} parent=11 // pred_region
          _
        $region24: #{tpu_custom_call.1} parent=11 // pred_fallthru
          _
        // Predicated region
        $region25: #{tpu_custom_call.1} parent=11 // pred_check
          %p320 = pneg %p134
        $region26: #{tpu_custom_call.1} parent=11 // pred_check_branch
          %322 = sbr.rel (%p320) target = $region28
        $region27: #{tpu_custom_call.1} parent=11 // pred_region
          _
        $region28: #{tpu_custom_call.1} parent=11 // pred_fallthru
          _
        // Predicated region
        $region29: #{tpu_custom_call.1} parent=11 // pred_check
          %p323 = pneg %p155
        $region30: #{tpu_custom_call.1} parent=11 // pred_check_branch
          %325 = sbr.rel (%p323) target = $region32
        $region31: #{tpu_custom_call.1} parent=11 // pred_region
          _
        $region32: #{tpu_custom_call.1} parent=11 // pred_fallthru
          _
        // Predicated region
        $region33: #{tpu_custom_call.1} parent=11 // pred_check
          %p326 = pneg %p176
        $region34: #{tpu_custom_call.1} parent=11 // pred_check_branch
          %328 = sbr.rel (%p326) target = $region36
        $region35: #{tpu_custom_call.1} parent=11 // pred_region
          _
        $region36: #{tpu_custom_call.1} parent=11 // pred_fallthru
          _
        // Predicated region
        $region37: #{tpu_custom_call.1} parent=11 // pred_check
          %p329 = pneg %p197
        $region38: #{tpu_custom_call.1} parent=11 // pred_check_branch
          %331 = sbr.rel (%p329) target = $region40
        $region39: #{tpu_custom_call.1} parent=11 // pred_region
          _
        $region40: #{tpu_custom_call.1} parent=11 // pred_fallthru
          _
        // Predicated region
        $region41: #{tpu_custom_call.1} parent=11 // pred_check
          %p332 = pneg %p218
        $region42: #{tpu_custom_call.1} parent=11 // pred_check_branch
          %334 = sbr.rel (%p332) target = $region44
        $region43: #{tpu_custom_call.1} parent=11 // pred_region
          _
        $region44: #{tpu_custom_call.1} parent=11 // pred_fallthru
          _
      $region12: #{tpu_custom_call.1} parent=5 // pred_fallthru
        _
      %p335 = scmp.lt.s32.totalorder %s24, 2
      // Predicated region
      $region45: #{tpu_custom_call.1} parent=5 // pred_check
        %p336 = pneg %p335
      $region46: #{tpu_custom_call.1} parent=5 // pred_check_branch
        %338 = sbr.rel (%p336) target = $region48
      $region47: #{tpu_custom_call.1} parent=5 // pred_region
        // Predicated region
        $region49: #{tpu_custom_call.1} parent=47 // pred_check
          %p339 = pneg %p44
        $region50: #{tpu_custom_call.1} parent=47 // pred_check_branch
          %341 = sbr.rel (%p339) target = $region52
        $region51: #{tpu_custom_call.1} parent=47 // pred_region
          %p342 = scmp.lt.s32.totalorder %s24, 1
          %s343 = scalar_select %p342, %s24, 1
          %s344 = smul.addr %s343, 8
          %s345 = smul.addr %s344, 8
          %s346 = scalar_lea.vmem %s0, %s345
        $region52: #{tpu_custom_call.1} parent=47 // pred_fallthru
          _
      $region48: #{tpu_custom_call.1} parent=5 // pred_fallthru
        _
      %p347 = scmp.le.s32.totalorder 1, %s24
      %p348 = scmp.lt.s32.totalorder %s24, 3
      %p349 = pnand %p347, %p348
      %p350 = pneg %p349
      // Predicated region
      $region53: #{tpu_custom_call.1} parent=5 // pred_check
        _
      $region54: #{tpu_custom_call.1} parent=5 // pred_check_branch
        %352 = sbr.rel (%p349) target = $region56
      $region55: #{tpu_custom_call.1} parent=5 // pred_region
        %s353 = ssub.s32 %s24, 1
        %p354 = scmp.lt.s32.totalorder %s29, 1
        %s355 = scalar_select %p354, %s29, 1
        %s356 = smul.addr %s355, 8
        %s357 = smul.addr %s356, 8
        %s358 = scalar_lea.vmem %s0, %s357
        %p359 = pneg %p50
        %p360 = pneg %p47
        %p361 = pneg %p71
        %p362 = pneg %p68
        %p363 = pneg %p92
        %p364 = pneg %p89
        %p365 = pneg %p113
        %p366 = pneg %p110
        %p367 = pneg %p134
        %p368 = pneg %p131
        %p369 = pneg %p155
        %p370 = pneg %p152
        %p371 = pneg %p176
        %p372 = pneg %p173
        %p373 = pneg %p197
        %p374 = pneg %p194
        %p375 = pneg %p218
        %p376 = pneg %p215
        %p377 = pneg %p244
        %p378 = pneg %p241
        %s379 = sand.u32 %s231, 1
        %s380 = scalar_lea.sflag [#allocation3], %s379
        %s381 = sand.u32 %s231, 1
        %s382 = smul.addr %s381, 32
        %s383 = scalar_lea.vmem [#allocation2], %s382
        %p384 = pneg %p270
        %p385 = pneg %p267
        %s386 = sand.u32 %s29, 1
        %s387 = scalar_lea.sflag [#allocation5], %s386
        %s388 = sand.u32 %s257, 1
        %s389 = smul.addr %s388, 32
        %s390 = scalar_lea.vmem [#allocation4], %s389
        %p391 = pneg %p296
        %p392 = pneg %p293
        %s393 = sand.u32 %s29, 1
        %s394 = scalar_lea.sflag [#allocation5], %s393
        %s395 = sand.u32 %s283, 1
        %s396 = smul.addr %s395, 32
        %s397 = scalar_lea.vmem [#allocation6], %s396
        %p398 = scmp.lt.s32.totalorder %s29, 1
        %s399 = scalar_select %p398, %s29, 1
        %s400 = smul.addr %s399, 8
        %s401 = smul.addr %s400, 8
        %s402 = scalar_lea.vmem %s0, %s401
        %v404 = vld [vmem:[%s402] sm:$0xff]
        %v405 = vld [vmem:[%s402 + $0x8] sm:$0xff]
        %v406 = vld [vmem:[%s402 + $0x10] sm:$0xff]
        %v407 = vld [vmem:[%s402 + $0x18] sm:$0xff]
        %v408 = vld [vmem:[%s402 + $0x20] sm:$0xff]
        %v409 = vld [vmem:[%s402 + $0x28] sm:$0xff]
        %v410 = vld [vmem:[%s402 + $0x30] sm:$0xff]
        %v411 = vld [vmem:[%s402 + $0x38] sm:$0xff]
        %vm412 = vcmask 523264
        %v414 = vsel %vm412, %v404, 0
        %v417 = vsel %vm412, %v405, 0
        %v420 = vsel %vm412, %v406, 0
        %v423 = vsel %vm412, %v407, 0
        %v426 = vsel %vm412, %v408, 0
        %v429 = vsel %vm412, %v409, 0
        %v432 = vsel %vm412, %v410, 0
        %v435 = vsel %vm412, %v411, 0
        %437 = vmatprep.subr.mxu0 0.0
        %438 = vmatpush1.msra.mxu0 1.0
        %439 = vmatprep.subr.mxu0 0.0
        %440 = vmatpush1.msra.mxu0 1.0
        %441 = vmatprep.subr.mxu0 0.0
        %442 = vmatpush1.msra.mxu0 1.0
        %443 = vmatprep.subr.mxu0 0.0
        %444 = vmatpush1.msra.mxu0 1.0
        %445 = vmatprep.subr.mxu0 0.0
        %446 = vmatpush1.msra.mxu0 1.0
        %447 = vmatprep.subr.mxu0 0.0
        %448 = vmatpush1.msra.mxu0 1.0
        %449 = vmatprep.subr.mxu0 0.0
        %450 = vmatpush1.msra.mxu0 1.0
        %451 = vmatprep.subr.mxu0 0.0
        %452 = vmatpush1.msra.mxu0 1.0
        %453 = vmatprep.subr.mxu0 0.0
        %454 = vmatpush1.msra.mxu0 0.0
        %455 = vmatprep.subr.mxu0 0.0
        %456 = vmatpush1.msra.mxu0 0.0
        %457 = vmatprep.subr.mxu0 0.0
        %458 = vmatpush1.msra.mxu0 0.0
        %459 = vmatprep.subr.mxu0 0.0
        %460 = vmatpush1.msra.mxu0 0.0
        %461 = vmatprep.subr.mxu0 0.0
        %462 = vmatpush1.msra.mxu0 0.0
        %463 = vmatprep.subr.mxu0 0.0
        %464 = vmatpush1.msra.mxu0 0.0
        %465 = vmatprep.subr.mxu0 0.0
        %466 = vmatpush1.msra.mxu0 0.0
        %467 = vmatprep.subr.mxu0 0.0
        %468 = vmatpush1.msra.mxu0 0.0
        %469 = vmatprep.subr.mxu0 0.0
        %470 = vmatpush1.msra.mxu0 0.0
        %471 = vmatprep.subr.mxu0 0.0
        %472 = vmatpush1.msra.mxu0 0.0
        %473 = vmatprep.subr.mxu0 0.0
        %474 = vmatpush1.msra.mxu0 0.0
        %475 = vmatprep.subr.mxu0 0.0
        %476 = vmatpush1.msra.mxu0 0.0
        %477 = vmatprep.subr.mxu0 0.0
        %478 = vmatpush1.msra.mxu0 0.0
        %479 = vmatprep.subr.mxu0 0.0
        %480 = vmatpush1.msra.mxu0 0.0
        %481 = vmatprep.subr.mxu0 0.0
        %482 = vmatpush1.msra.mxu0 0.0
        %483 = vmatprep.subr.mxu0 0.0
        %484 = vmatpush1.msra.mxu0 0.0
        %485 = vmatprep.subr.mxu0 0.0
        %486 = vmatpush1.msra.mxu0 0.0
        %487 = vmatprep.subr.mxu0 0.0
        %488 = vmatpush1.msra.mxu0 0.0
        %489 = vmatprep.subr.mxu0 0.0
        %490 = vmatpush1.msra.mxu0 0.0
        %491 = vmatprep.subr.mxu0 0.0
        %492 = vmatpush1.msra.mxu0 0.0
        %493 = vmatprep.subr.mxu0 0.0
        %494 = vmatpush1.msra.mxu0 0.0
        %495 = vmatprep.subr.mxu0 0.0
        %496 = vmatpush1.msra.mxu0 0.0
        %497 = vmatprep.subr.mxu0 0.0
        %498 = vmatpush1.msra.mxu0 0.0
        %499 = vmatprep.subr.mxu0 0.0
        %500 = vmatpush1.msra.mxu0 0.0
        %501 = vmatprep.mubr.f32.mxu0 0.0
        %502 = vmatmul.mubr.f32.gmra.mrb[0].mxu0 %v414
        %v503 = vpop.f32.mrb[0].mxu0
        %v504 = vadd.f32 0.0, %v503
        %v505 = vpop.f32.mrb[0].mxu0
        %506 = vmatprep.mubr.f32.mxu0 0.0
        %507 = vmatmul.mubr.f32.gmra.mrb[0].mxu0 %v417
        %v508 = vpop.f32.mrb[0].mxu0
        %v509 = vadd.f32 0.0, %v508
        %v510 = vpop.f32.mrb[0].mxu0
        %511 = vmatprep.mubr.f32.mxu0 0.0
        %512 = vmatmul.mubr.f32.gmra.mrb[0].mxu0 %v420
        %v513 = vpop.f32.mrb[0].mxu0
        %v514 = vadd.f32 0.0, %v513
        %v515 = vpop.f32.mrb[0].mxu0
        %516 = vmatprep.mubr.f32.mxu0 0.0
        %517 = vmatmul.mubr.f32.gmra.mrb[0].mxu0 %v423
        %v518 = vpop.f32.mrb[0].mxu0
        %v519 = vadd.f32 0.0, %v518
        %v520 = vpop.f32.mrb[0].mxu0
        %521 = vmatprep.mubr.f32.mxu0 0.0
        %522 = vmatmul.mubr.f32.gmra.mrb[0].mxu0 %v426
        %v523 = vpop.f32.mrb[0].mxu0
        %v524 = vadd.f32 0.0, %v523
        %v525 = vpop.f32.mrb[0].mxu0
        %526 = vmatprep.mubr.f32.mxu0 0.0
        %527 = vmatmul.mubr.f32.gmra.mrb[0].mxu0 %v429
        %v528 = vpop.f32.mrb[0].mxu0
        %v529 = vadd.f32 0.0, %v528
        %v530 = vpop.f32.mrb[0].mxu0
        %531 = vmatprep.mubr.f32.mxu0 0.0
        %532 = vmatmul.mubr.f32.gmra.mrb[0].mxu0 %v432
        %v533 = vpop.f32.mrb[0].mxu0
        %v534 = vadd.f32 0.0, %v533
        %v535 = vpop.f32.mrb[0].mxu0
        %536 = vmatprep.mubr.f32.mxu0 0.0
        %537 = vmatmul.mubr.f32.gmra.mrb[0].mxu0 %v435
        %v538 = vpop.f32.mrb[0].mxu0
        %v539 = vadd.f32 0.0, %v538
        %v540 = vpop.f32.mrb[0].mxu0
        %541 = vdwg.mxu0
        %v542 = vld [vmem:[%s4] sm:$0xff]
        %v543 = vld [vmem:[%s4 + $0x8] sm:$0xff]
        %v544 = vld [vmem:[%s4 + $0x10] sm:$0xff]
        %v545 = vld [vmem:[%s4 + $0x18] sm:$0xff]
        %v547 = vsel %vm412, %v542, 0
        %v550 = vsel %vm412, %v543, 0
        %v553 = vsel %vm412, %v544, 0
        %v556 = vsel %vm412, %v545, 0
        %558 = vmatprep.subr.mxu0 0.0
        %559 = vmatpush1.msra.mxu0 %v504
        %560 = vmatprep.subr.mxu0 0.0
        %561 = vmatpush1.msra.mxu0 %v509
        %562 = vmatprep.subr.mxu0 0.0
        %563 = vmatpush1.msra.mxu0 %v514
        %564 = vmatprep.subr.mxu0 0.0
        %565 = vmatpush1.msra.mxu0 %v519
        %566 = vmatprep.subr.mxu0 0.0
        %567 = vmatpush1.msra.mxu0 %v524
        %568 = vmatprep.subr.mxu0 0.0
        %569 = vmatpush1.msra.mxu0 %v529
        %570 = vmatprep.subr.mxu0 0.0
        %571 = vmatpush1.msra.mxu0 %v534
        %572 = vmatprep.subr.mxu0 0.0
        %573 = vmatpush1.msra.mxu0 %v539
        %574 = vmatprep.subr.mxu0 0.0
        %575 = vmatpush1.msra.mxu0 0.0
        %576 = vmatprep.subr.mxu0 0.0
        %577 = vmatpush1.msra.mxu0 0.0
        %578 = vmatprep.subr.mxu0 0.0
        %579 = vmatpush1.msra.mxu0 0.0
        %580 = vmatprep.subr.mxu0 0.0
        %581 = vmatpush1.msra.mxu0 0.0
        %582 = vmatprep.subr.mxu0 0.0
        %583 = vmatpush1.msra.mxu0 0.0
        %584 = vmatprep.subr.mxu0 0.0
        %585 = vmatpush1.msra.mxu0 0.0
        %586 = vmatprep.subr.mxu0 0.0
        %587 = vmatpush1.msra.mxu0 0.0
        %588 = vmatprep.subr.mxu0 0.0
        %589 = vmatpush1.msra.mxu0 0.0
        %590 = vmatprep.subr.mxu0 0.0
        %591 = vmatpush1.msra.mxu0 0.0
        %592 = vmatprep.subr.mxu0 0.0
        %593 = vmatpush1.msra.mxu0 0.0
        %594 = vmatprep.subr.mxu0 0.0
        %595 = vmatpush1.msra.mxu0 0.0
        %596 = vmatprep.subr.mxu0 0.0
        %597 = vmatpush1.msra.mxu0 0.0
        %598 = vmatprep.subr.mxu0 0.0
        %599 = vmatpush1.msra.mxu0 0.0
        %600 = vmatprep.subr.mxu0 0.0
        %601 = vmatpush1.msra.mxu0 0.0
        %602 = vmatprep.subr.mxu0 0.0
        %603 = vmatpush1.msra.mxu0 0.0
        %604 = vmatprep.subr.mxu0 0.0
        %605 = vmatpush1.msra.mxu0 0.0
        %606 = vmatprep.subr.mxu0 0.0
        %607 = vmatpush1.msra.mxu0 0.0
        %608 = vmatprep.subr.mxu0 0.0
        %609 = vmatpush1.msra.mxu0 0.0
        %610 = vmatprep.subr.mxu0 0.0
        %611 = vmatpush1.msra.mxu0 0.0
        %612 = vmatprep.subr.mxu0 0.0
        %613 = vmatpush1.msra.mxu0 0.0
        %614 = vmatprep.subr.mxu0 0.0
        %615 = vmatpush1.msra.mxu0 0.0
        %616 = vmatprep.subr.mxu0 0.0
        %617 = vmatpush1.msra.mxu0 0.0
        %618 = vmatprep.subr.mxu0 0.0
        %619 = vmatpush1.msra.mxu0 0.0
        %620 = vmatprep.subr.mxu0 0.0
        %621 = vmatpush1.msra.mxu0 0.0
        %622 = vmatprep.mubr.f32.mxu0 0.0
        %623 = vmatmul.mubr.f32.gmra.mrb[0].mxu0 %v547
        %v624 = vpop.f32.mrb[0].mxu0
        %v625 = vadd.f32 0.0, %v624
        %v626 = vpop.f32.mrb[0].mxu0
        %627 = vmatprep.mubr.f32.mxu0 0.0
        %628 = vmatmul.mubr.f32.gmra.mrb[0].mxu0 %v550
        %v629 = vpop.f32.mrb[0].mxu0
        %v630 = vadd.f32 0.0, %v629
        %v631 = vpop.f32.mrb[0].mxu0
        %632 = vmatprep.mubr.f32.mxu0 0.0
        %633 = vmatmul.mubr.f32.gmra.mrb[0].mxu0 %v553
        %v634 = vpop.f32.mrb[0].mxu0
        %v635 = vadd.f32 0.0, %v634
        %v636 = vpop.f32.mrb[0].mxu0
        %637 = vmatprep.mubr.f32.mxu0 0.0
        %638 = vmatmul.mubr.f32.gmra.mrb[0].mxu0 %v556
        %v639 = vpop.f32.mrb[0].mxu0
        %v640 = vadd.f32 0.0, %v639
        %v641 = vpop.f32.mrb[0].mxu0
        %642 = vdwg.mxu0
        %v643 = vmul.f32 %v625, 0.0078125
        %v644 = vmul.f32 %v630, 0.0078125
        %v645 = vmul.f32 %v635, 0.0078125
        %v646 = vmul.f32 %v640, 0.0078125
        %v647 = vld [vmem:[%s3] sm:$0xff]
        %v648 = vld [vmem:[%s3 + $0x8] sm:$0xff]
        %v649 = vld [vmem:[%s3 + $0x10] sm:$0xff]
        %v650 = vld [vmem:[%s3 + $0x18] sm:$0xff]
        %v651 = vld [vmem:[%s3 + $0x20] sm:$0xff]
        %v652 = vld [vmem:[%s3 + $0x28] sm:$0xff]
        %v653 = vld [vmem:[%s3 + $0x30] sm:$0xff]
        %v654 = vld [vmem:[%s3 + $0x38] sm:$0xff]
        %vm655 = vcmask 261120
        %v657 = vsel %vm655, %v647, 0
        %v660 = vsel %vm655, %v648, 0
        %v663 = vsel %vm655, %v649, 0
        %v666 = vsel %vm655, %v650, 0
        %v669 = vsel %vm655, %v651, 0
        %v672 = vsel %vm655, %v652, 0
        %v675 = vsel %vm655, %v653, 0
        %v678 = vsel %vm655, %v654, 0
        %680 = vmatprep.subr.mxu0 0.0
        %681 = vmatpush1.msra.mxu0 %v643
        %682 = vmatprep.subr.mxu0 0.0
        %683 = vmatpush1.msra.mxu0 %v644
        %684 = vmatprep.subr.mxu0 0.0
        %685 = vmatpush1.msra.mxu0 %v645
        %686 = vmatprep.subr.mxu0 0.0
        %687 = vmatpush1.msra.mxu0 %v646
        %688 = vmatprep.subr.mxu0 0.0
        %689 = vmatpush1.msra.mxu0 0.0
        %690 = vmatprep.subr.mxu0 0.0
        %691 = vmatpush1.msra.mxu0 0.0
        %692 = vmatprep.subr.mxu0 0.0
        %693 = vmatpush1.msra.mxu0 0.0
        %694 = vmatprep.subr.mxu0 0.0
        %695 = vmatpush1.msra.mxu0 0.0
        %696 = vmatprep.subr.mxu0 0.0
        %697 = vmatpush1.msra.mxu0 0.0
        %698 = vmatprep.subr.mxu0 0.0
        %699 = vmatpush1.msra.mxu0 0.0
        %700 = vmatprep.subr.mxu0 0.0
        %701 = vmatpush1.msra.mxu0 0.0
        %702 = vmatprep.subr.mxu0 0.0
        %703 = vmatpush1.msra.mxu0 0.0
        %704 = vmatprep.subr.mxu0 0.0
        %705 = vmatpush1.msra.mxu0 0.0
        %706 = vmatprep.subr.mxu0 0.0
        %707 = vmatpush1.msra.mxu0 0.0
        %708 = vmatprep.subr.mxu0 0.0
        %709 = vmatpush1.msra.mxu0 0.0
        %710 = vmatprep.subr.mxu0 0.0
        %711 = vmatpush1.msra.mxu0 0.0
        %712 = vmatprep.subr.mxu0 0.0
        %713 = vmatpush1.msra.mxu0 0.0
        %714 = vmatprep.subr.mxu0 0.0
        %715 = vmatpush1.msra.mxu0 0.0
        %716 = vmatprep.subr.mxu0 0.0
        %717 = vmatpush1.msra.mxu0 0.0
        %718 = vmatprep.subr.mxu0 0.0
        %719 = vmatpush1.msra.mxu0 0.0
        %720 = vmatprep.subr.mxu0 0.0
        %721 = vmatpush1.msra.mxu0 0.0
        %722 = vmatprep.subr.mxu0 0.0
        %723 = vmatpush1.msra.mxu0 0.0
        %724 = vmatprep.subr.mxu0 0.0
        %725 = vmatpush1.msra.mxu0 0.0
        %726 = vmatprep.subr.mxu0 0.0
        %727 = vmatpush1.msra.mxu0 0.0
        %728 = vmatprep.subr.mxu0 0.0
        %729 = vmatpush1.msra.mxu0 0.0
        %730 = vmatprep.subr.mxu0 0.0
        %731 = vmatpush1.msra.mxu0 0.0
        %732 = vmatprep.subr.mxu0 0.0
        %733 = vmatpush1.msra.mxu0 0.0
        %734 = vmatprep.subr.mxu0 0.0
        %735 = vmatpush1.msra.mxu0 0.0
        %736 = vmatprep.subr.mxu0 0.0
        %737 = vmatpush1.msra.mxu0 0.0
        %738 = vmatprep.subr.mxu0 0.0
        %739 = vmatpush1.msra.mxu0 0.0
        %740 = vmatprep.subr.mxu0 0.0
        %741 = vmatpush1.msra.mxu0 0.0
        %742 = vmatprep.subr.mxu0 0.0
        %743 = vmatpush1.msra.mxu0 0.0
        %744 = vmatprep.mubr.f32.mxu0 0.0
        %745 = vmatmul.mubr.f32.gmra.mrb[0].mxu0 %v657
        %v746 = vpop.f32.mrb[0].mxu0
        %v747 = vadd.f32 0.0, %v746
        %v748 = vpop.f32.mrb[0].mxu0
        %749 = vmatprep.mubr.f32.mxu0 0.0
        %750 = vmatmul.mubr.f32.gmra.mrb[0].mxu0 %v660
        %v751 = vpop.f32.mrb[0].mxu0
        %v752 = vadd.f32 0.0, %v751
        %v753 = vpop.f32.mrb[0].mxu0
        %754 = vmatprep.mubr.f32.mxu0 0.0
        %755 = vmatmul.mubr.f32.gmra.mrb[0].mxu0 %v663
        %v756 = vpop.f32.mrb[0].mxu0
        %v757 = vadd.f32 0.0, %v756
        %v758 = vpop.f32.mrb[0].mxu0
        %759 = vmatprep.mubr.f32.mxu0 0.0
        %760 = vmatmul.mubr.f32.gmra.mrb[0].mxu0 %v666
        %v761 = vpop.f32.mrb[0].mxu0
        %v762 = vadd.f32 0.0, %v761
        %v763 = vpop.f32.mrb[0].mxu0
        %764 = vmatprep.mubr.f32.mxu0 0.0
        %765 = vmatmul.mubr.f32.gmra.mrb[0].mxu0 %v669
        %v766 = vpop.f32.mrb[0].mxu0
        %v767 = vadd.f32 0.0, %v766
        %v768 = vpop.f32.mrb[0].mxu0
        %769 = vmatprep.mubr.f32.mxu0 0.0
        %770 = vmatmul.mubr.f32.gmra.mrb[0].mxu0 %v672
        %v771 = vpop.f32.mrb[0].mxu0
        %v772 = vadd.f32 0.0, %v771
        %v773 = vpop.f32.mrb[0].mxu0
        %774 = vmatprep.mubr.f32.mxu0 0.0
        %775 = vmatmul.mubr.f32.gmra.mrb[0].mxu0 %v675
        %v776 = vpop.f32.mrb[0].mxu0
        %v777 = vadd.f32 0.0, %v776
        %v778 = vpop.f32.mrb[0].mxu0
        %779 = vmatprep.mubr.f32.mxu0 0.0
        %780 = vmatmul.mubr.f32.gmra.mrb[0].mxu0 %v678
        %v781 = vpop.f32.mrb[0].mxu0
        %v782 = vadd.f32 0.0, %v781
        %v783 = vpop.f32.mrb[0].mxu0
        %784 = vdwg.mxu0
        %786 = vset.pattern.permute.xlu0 0
        %787 = vperm.xlu0 %786, %v747
        %v788 = vpop.permute.xlu0 %787
        %791 = vset.pattern.permute.xlu0 0
        %792 = vperm.xlu0 %791, %v752
        %v793 = vpop.permute.xlu0 %792
        %796 = vset.pattern.permute.xlu0 0
        %797 = vperm.xlu0 %796, %v757
        %v798 = vpop.permute.xlu0 %797
        %801 = vset.pattern.permute.xlu0 0
        %802 = vperm.xlu0 %801, %v762
        %v803 = vpop.permute.xlu0 %802
        %806 = vset.pattern.permute.xlu0 0
        %807 = vperm.xlu0 %806, %v767
        %v808 = vpop.permute.xlu0 %807
        %811 = vset.pattern.permute.xlu0 0
        %812 = vperm.xlu0 %811, %v772
        %v813 = vpop.permute.xlu0 %812
        %816 = vset.pattern.permute.xlu0 0
        %817 = vperm.xlu0 %816, %v777
        %v818 = vpop.permute.xlu0 %817
        %821 = vset.pattern.permute.xlu0 0
        %822 = vperm.xlu0 %821, %v782
        %v823 = vpop.permute.xlu0 %822
        %v825 = vsub.f32 %v404, %v788
        %v826 = vsub.f32 %v405, %v793
        %v827 = vsub.f32 %v406, %v798
        %v828 = vsub.f32 %v407, %v803
        %v829 = vsub.f32 %v408, %v808
        %v830 = vsub.f32 %v409, %v813
        %v831 = vsub.f32 %v410, %v818
        %v832 = vsub.f32 %v411, %v823
        %v833 = vmul.f32 %v825, %v825
        %v834 = vmul.f32 %v826, %v826
        %v835 = vmul.f32 %v827, %v827
        %v836 = vmul.f32 %v828, %v828
        %v837 = vmul.f32 %v829, %v829
        %v838 = vmul.f32 %v830, %v830
        %v839 = vmul.f32 %v831, %v831
        %v840 = vmul.f32 %v832, %v832
        %v842 = vsel %vm412, %v833, 0
        %v845 = vsel %vm412, %v834, 0
        %v848 = vsel %vm412, %v835, 0
        %v851 = vsel %vm412, %v836, 0
        %v854 = vsel %vm412, %v837, 0
        %v857 = vsel %vm412, %v838, 0
        %v860 = vsel %vm412, %v839, 0
        %v863 = vsel %vm412, %v840, 0
        %865 = vmatprep.subr.mxu0 0.0
        %866 = vmatpush1.msra.mxu0 1.0
        %867 = vmatprep.subr.mxu0 0.0
        %868 = vmatpush1.msra.mxu0 1.0
        %869 = vmatprep.subr.mxu0 0.0
        %870 = vmatpush1.msra.mxu0 1.0
        %871 = vmatprep.subr.mxu0 0.0
        %872 = vmatpush1.msra.mxu0 1.0
        %873 = vmatprep.subr.mxu0 0.0
        %874 = vmatpush1.msra.mxu0 1.0
        %875 = vmatprep.subr.mxu0 0.0
        %876 = vmatpush1.msra.mxu0 1.0
        %877 = vmatprep.subr.mxu0 0.0
        %878 = vmatpush1.msra.mxu0 1.0
        %879 = vmatprep.subr.mxu0 0.0
        %880 = vmatpush1.msra.mxu0 1.0
        %881 = vmatprep.subr.mxu0 0.0
        %882 = vmatpush1.msra.mxu0 0.0
        %883 = vmatprep.subr.mxu0 0.0
        %884 = vmatpush1.msra.mxu0 0.0
        %885 = vmatprep.subr.mxu0 0.0
        %886 = vmatpush1.msra.mxu0 0.0
        %887 = vmatprep.subr.mxu0 0.0
        %888 = vmatpush1.msra.mxu0 0.0
        %889 = vmatprep.subr.mxu0 0.0
        %890 = vmatpush1.msra.mxu0 0.0
        %891 = vmatprep.subr.mxu0 0.0
        %892 = vmatpush1.msra.mxu0 0.0
        %893 = vmatprep.subr.mxu0 0.0
        %894 = vmatpush1.msra.mxu0 0.0
        %895 = vmatprep.subr.mxu0 0.0
        %896 = vmatpush1.msra.mxu0 0.0
        %897 = vmatprep.subr.mxu0 0.0
        %898 = vmatpush1.msra.mxu0 0.0
        %899 = vmatprep.subr.mxu0 0.0
        %900 = vmatpush1.msra.mxu0 0.0
        %901 = vmatprep.subr.mxu0 0.0
        %902 = vmatpush1.msra.mxu0 0.0
        %903 = vmatprep.subr.mxu0 0.0
        %904 = vmatpush1.msra.mxu0 0.0
        %905 = vmatprep.subr.mxu0 0.0
        %906 = vmatpush1.msra.mxu0 0.0
        %907 = vmatprep.subr.mxu0 0.0
        %908 = vmatpush1.msra.mxu0 0.0
        %909 = vmatprep.subr.mxu0 0.0
        %910 = vmatpush1.msra.mxu0 0.0
        %911 = vmatprep.subr.mxu0 0.0
        %912 = vmatpush1.msra.mxu0 0.0
        %913 = vmatprep.subr.mxu0 0.0
        %914 = vmatpush1.msra.mxu0 0.0
        %915 = vmatprep.subr.mxu0 0.0
        %916 = vmatpush1.msra.mxu0 0.0
        %917 = vmatprep.subr.mxu0 0.0
        %918 = vmatpush1.msra.mxu0 0.0
        %919 = vmatprep.subr.mxu0 0.0
        %920 = vmatpush1.msra.mxu0 0.0
        %921 = vmatprep.subr.mxu0 0.0
        %922 = vmatpush1.msra.mxu0 0.0
        %923 = vmatprep.subr.mxu0 0.0
        %924 = vmatpush1.msra.mxu0 0.0
        %925 = vmatprep.subr.mxu0 0.0
        %926 = vmatpush1.msra.mxu0 0.0
        %927 = vmatprep.subr.mxu0 0.0
        %928 = vmatpush1.msra.mxu0 0.0
        %929 = vmatprep.mubr.f32.mxu0 0.0
        %930 = vmatmul.mubr.f32.gmra.mrb[0].mxu0 %v842
        %v931 = vpop.f32.mrb[0].mxu0
        %v932 = vadd.f32 0.0, %v931
        %v933 = vpop.f32.mrb[0].mxu0
        %934 = vmatprep.mubr.f32.mxu0 0.0
        %935 = vmatmul.mubr.f32.gmra.mrb[0].mxu0 %v845
        %v936 = vpop.f32.mrb[0].mxu0
        %v937 = vadd.f32 0.0, %v936
        %v938 = vpop.f32.mrb[0].mxu0
        %939 = vmatprep.mubr.f32.mxu0 0.0
        %940 = vmatmul.mubr.f32.gmra.mrb[0].mxu0 %v848
        %v941 = vpop.f32.mrb[0].mxu0
        %v942 = vadd.f32 0.0, %v941
        %v943 = vpop.f32.mrb[0].mxu0
        %944 = vmatprep.mubr.f32.mxu0 0.0
        %945 = vmatmul.mubr.f32.gmra.mrb[0].mxu0 %v851
        %v946 = vpop.f32.mrb[0].mxu0
        %v947 = vadd.f32 0.0, %v946
        %v948 = vpop.f32.mrb[0].mxu0
        %949 = vmatprep.mubr.f32.mxu0 0.0
        %950 = vmatmul.mubr.f32.gmra.mrb[0].mxu0 %v854
        %v951 = vpop.f32.mrb[0].mxu0
        %v952 = vadd.f32 0.0, %v951
        %v953 = vpop.f32.mrb[0].mxu0
        %954 = vmatprep.mubr.f32.mxu0 0.0
        %955 = vmatmul.mubr.f32.gmra.mrb[0].mxu0 %v857
        %v956 = vpop.f32.mrb[0].mxu0
        %v957 = vadd.f32 0.0, %v956
        %v958 = vpop.f32.mrb[0].mxu0
        %959 = vmatprep.mubr.f32.mxu0 0.0
        %960 = vmatmul.mubr.f32.gmra.mrb[0].mxu0 %v860
        %v961 = vpop.f32.mrb[0].mxu0
        %v962 = vadd.f32 0.0, %v961
        %v963 = vpop.f32.mrb[0].mxu0
        %964 = vmatprep.mubr.f32.mxu0 0.0
        %965 = vmatmul.mubr.f32.gmra.mrb[0].mxu0 %v863
        %v966 = vpop.f32.mrb[0].mxu0
        %v967 = vadd.f32 0.0, %v966
        %v968 = vpop.f32.mrb[0].mxu0
        %969 = vdwg.mxu0
        %970 = vmatprep.subr.mxu0 0.0
        %971 = vmatpush1.msra.mxu0 %v932
        %972 = vmatprep.subr.mxu0 0.0
        %973 = vmatpush1.msra.mxu0 %v937
        %974 = vmatprep.subr.mxu0 0.0
        %975 = vmatpush1.msra.mxu0 %v942
        %976 = vmatprep.subr.mxu0 0.0
        %977 = vmatpush1.msra.mxu0 %v947
        %978 = vmatprep.subr.mxu0 0.0
        %979 = vmatpush1.msra.mxu0 %v952
        %980 = vmatprep.subr.mxu0 0.0
        %981 = vmatpush1.msra.mxu0 %v957
        %982 = vmatprep.subr.mxu0 0.0
        %983 = vmatpush1.msra.mxu0 %v962
        %984 = vmatprep.subr.mxu0 0.0
        %985 = vmatpush1.msra.mxu0 %v967
        %986 = vmatprep.subr.mxu0 0.0
        %987 = vmatpush1.msra.mxu0 0.0
        %988 = vmatprep.subr.mxu0 0.0
        %989 = vmatpush1.msra.mxu0 0.0
        %990 = vmatprep.subr.mxu0 0.0
        %991 = vmatpush1.msra.mxu0 0.0
        %992 = vmatprep.subr.mxu0 0.0
        %993 = vmatpush1.msra.mxu0 0.0
        %994 = vmatprep.subr.mxu0 0.0
        %995 = vmatpush1.msra.mxu0 0.0
        %996 = vmatprep.subr.mxu0 0.0
        %997 = vmatpush1.msra.mxu0 0.0
        %998 = vmatprep.subr.mxu0 0.0
        %999 = vmatpush1.msra.mxu0 0.0
        %1000 = vmatprep.subr.mxu0 0.0
        %1001 = vmatpush1.msra.mxu0 0.0
        %1002 = vmatprep.subr.mxu0 0.0
        %1003 = vmatpush1.msra.mxu0 0.0
        %1004 = vmatprep.subr.mxu0 0.0
        %1005 = vmatpush1.msra.mxu0 0.0
        %1006 = vmatprep.subr.mxu0 0.0
        %1007 = vmatpush1.msra.mxu0 0.0
        %1008 = vmatprep.subr.mxu0 0.0
        %1009 = vmatpush1.msra.mxu0 0.0
        %1010 = vmatprep.subr.mxu0 0.0
        %1011 = vmatpush1.msra.mxu0 0.0
        %1012 = vmatprep.subr.mxu0 0.0
        %1013 = vmatpush1.msra.mxu0 0.0
        %1014 = vmatprep.subr.mxu0 0.0
        %1015 = vmatpush1.msra.mxu0 0.0
        %1016 = vmatprep.subr.mxu0 0.0
        %1017 = vmatpush1.msra.mxu0 0.0
        %1018 = vmatprep.subr.mxu0 0.0
        %1019 = vmatpush1.msra.mxu0 0.0
        %1020 = vmatprep.subr.mxu0 0.0
        %1021 = vmatpush1.msra.mxu0 0.0
        %1022 = vmatprep.subr.mxu0 0.0
        %1023 = vmatpush1.msra.mxu0 0.0
        %1024 = vmatprep.subr.mxu0 0.0
        %1025 = vmatpush1.msra.mxu0 0.0
        %1026 = vmatprep.subr.mxu0 0.0
        %1027 = vmatpush1.msra.mxu0 0.0
        %1028 = vmatprep.subr.mxu0 0.0
        %1029 = vmatpush1.msra.mxu0 0.0
        %1030 = vmatprep.subr.mxu0 0.0
        %1031 = vmatpush1.msra.mxu0 0.0
        %1032 = vmatprep.subr.mxu0 0.0
        %1033 = vmatpush1.msra.mxu0 0.0
        %1034 = vmatprep.mubr.f32.mxu0 0.0
        %1035 = vmatmul.mubr.f32.gmra.mrb[0].mxu0 %v547
        %v1036 = vpop.f32.mrb[0].mxu0
        %v1037 = vadd.f32 0.0, %v1036
        %v1038 = vpop.f32.mrb[0].mxu0
        %1039 = vmatprep.mubr.f32.mxu0 0.0
        %1040 = vmatmul.mubr.f32.gmra.mrb[0].mxu0 %v550
        %v1041 = vpop.f32.mrb[0].mxu0
        %v1042 = vadd.f32 0.0, %v1041
        %v1043 = vpop.f32.mrb[0].mxu0
        %1044 = vmatprep.mubr.f32.mxu0 0.0
        %1045 = vmatmul.mubr.f32.gmra.mrb[0].mxu0 %v553
        %v1046 = vpop.f32.mrb[0].mxu0
        %v1047 = vadd.f32 0.0, %v1046
        %v1048 = vpop.f32.mrb[0].mxu0
        %1049 = vmatprep.mubr.f32.mxu0 0.0
        %1050 = vmatmul.mubr.f32.gmra.mrb[0].mxu0 %v556
        %v1051 = vpop.f32.mrb[0].mxu0
        %v1052 = vadd.f32 0.0, %v1051
        %v1053 = vpop.f32.mrb[0].mxu0
        %1054 = vdwg.mxu0
        %v1055 = vmul.f32 %v1037, 0.0078125
        %v1056 = vmul.f32 %v1042, 0.0078125
        %v1057 = vmul.f32 %v1047, 0.0078125
        %v1058 = vmul.f32 %v1052, 0.0078125
        %v1059 = vadd.f32 %v1055, 1e-05
        %v1060 = vadd.f32 %v1056, 1e-05
        %v1061 = vadd.f32 %v1057, 1e-05
        %v1062 = vadd.f32 %v1058, 1e-05
        %v1063 = vrsqrt.pop %v1059
        %v1064 = vrsqrt.pop %v1060
        %v1065 = vrsqrt.pop %v1061
        %v1066 = vrsqrt.pop %v1062
        %1067 = vmatprep.subr.mxu0 0.0
        %1068 = vmatpush1.msra.mxu0 %v1063
        %1069 = vmatprep.subr.mxu0 0.0
        %1070 = vmatpush1.msra.mxu0 %v1064
        %1071 = vmatprep.subr.mxu0 0.0
        %1072 = vmatpush1.msra.mxu0 %v1065
        %1073 = vmatprep.subr.mxu0 0.0
        %1074 = vmatpush1.msra.mxu0 %v1066
        %1075 = vmatprep.subr.mxu0 0.0
        %1076 = vmatpush1.msra.mxu0 0.0
        %1077 = vmatprep.subr.mxu0 0.0
        %1078 = vmatpush1.msra.mxu0 0.0
        %1079 = vmatprep.subr.mxu0 0.0
        %1080 = vmatpush1.msra.mxu0 0.0
        %1081 = vmatprep.subr.mxu0 0.0
        %1082 = vmatpush1.msra.mxu0 0.0
        %1083 = vmatprep.subr.mxu0 0.0
        %1084 = vmatpush1.msra.mxu0 0.0
        %1085 = vmatprep.subr.mxu0 0.0
        %1086 = vmatpush1.msra.mxu0 0.0
        %1087 = vmatprep.subr.mxu0 0.0
        %1088 = vmatpush1.msra.mxu0 0.0
        %1089 = vmatprep.subr.mxu0 0.0
        %1090 = vmatpush1.msra.mxu0 0.0
        %1091 = vmatprep.subr.mxu0 0.0
        %1092 = vmatpush1.msra.mxu0 0.0
        %1093 = vmatprep.subr.mxu0 0.0
        %1094 = vmatpush1.msra.mxu0 0.0
        %1095 = vmatprep.subr.mxu0 0.0
        %1096 = vmatpush1.msra.mxu0 0.0
        %1097 = vmatprep.subr.mxu0 0.0
        %1098 = vmatpush1.msra.mxu0 0.0
        %1099 = vmatprep.subr.mxu0 0.0
        %1100 = vmatpush1.msra.mxu0 0.0
        %1101 = vmatprep.subr.mxu0 0.0
        %1102 = vmatpush1.msra.mxu0 0.0
        %1103 = vmatprep.subr.mxu0 0.0
        %1104 = vmatpush1.msra.mxu0 0.0
        %1105 = vmatprep.subr.mxu0 0.0
        %1106 = vmatpush1.msra.mxu0 0.0
        %1107 = vmatprep.subr.mxu0 0.0
        %1108 = vmatpush1.msra.mxu0 0.0
        %1109 = vmatprep.subr.mxu0 0.0
        %1110 = vmatpush1.msra.mxu0 0.0
        %1111 = vmatprep.subr.mxu0 0.0
        %1112 = vmatpush1.msra.mxu0 0.0
        %1113 = vmatprep.subr.mxu0 0.0
        %1114 = vmatpush1.msra.mxu0 0.0
        %1115 = vmatprep.subr.mxu0 0.0
        %1116 = vmatpush1.msra.mxu0 0.0
        %1117 = vmatprep.subr.mxu0 0.0
        %1118 = vmatpush1.msra.mxu0 0.0
        %1119 = vmatprep.subr.mxu0 0.0
        %1120 = vmatpush1.msra.mxu0 0.0
        %1121 = vmatprep.subr.mxu0 0.0
        %1122 = vmatpush1.msra.mxu0 0.0
        %1123 = vmatprep.subr.mxu0 0.0
        %1124 = vmatpush1.msra.mxu0 0.0
        %1125 = vmatprep.subr.mxu0 0.0
        %1126 = vmatpush1.msra.mxu0 0.0
        %1127 = vmatprep.subr.mxu0 0.0
        %1128 = vmatpush1.msra.mxu0 0.0
        %1129 = vmatprep.subr.mxu0 0.0
        %1130 = vmatpush1.msra.mxu0 0.0
        %1131 = vmatprep.mubr.f32.mxu0 0.0
        %1132 = vmatmul.mubr.f32.gmra.mrb[0].mxu0 %v657
        %v1133 = vpop.f32.mrb[0].mxu0
        %v1134 = vadd.f32 0.0, %v1133
        %v1135 = vpop.f32.mrb[0].mxu0
        %1136 = vmatprep.mubr.f32.mxu0 0.0
        %1137 = vmatmul.mubr.f32.gmra.mrb[0].mxu0 %v660
        %v1138 = vpop.f32.mrb[0].mxu0
        %v1139 = vadd.f32 0.0, %v1138
        %v1140 = vpop.f32.mrb[0].mxu0
        %1141 = vmatprep.mubr.f32.mxu0 0.0
        %1142 = vmatmul.mubr.f32.gmra.mrb[0].mxu0 %v663
        %v1143 = vpop.f32.mrb[0].mxu0
        %v1144 = vadd.f32 0.0, %v1143
        %v1145 = vpop.f32.mrb[0].mxu0
        %1146 = vmatprep.mubr.f32.mxu0 0.0
        %1147 = vmatmul.mubr.f32.gmra.mrb[0].mxu0 %v666
        %v1148 = vpop.f32.mrb[0].mxu0
        %v1149 = vadd.f32 0.0, %v1148
        %v1150 = vpop.f32.mrb[0].mxu0
        %1151 = vmatprep.mubr.f32.mxu0 0.0
        %1152 = vmatmul.mubr.f32.gmra.mrb[0].mxu0 %v669
        %v1153 = vpop.f32.mrb[0].mxu0
        %v1154 = vadd.f32 0.0, %v1153
        %v1155 = vpop.f32.mrb[0].mxu0
        %1156 = vmatprep.mubr.f32.mxu0 0.0
        %1157 = vmatmul.mubr.f32.gmra.mrb[0].mxu0 %v672
        %v1158 = vpop.f32.mrb[0].mxu0
        %v1159 = vadd.f32 0.0, %v1158
        %v1160 = vpop.f32.mrb[0].mxu0
        %1161 = vmatprep.mubr.f32.mxu0 0.0
        %1162 = vmatmul.mubr.f32.gmra.mrb[0].mxu0 %v675
        %v1163 = vpop.f32.mrb[0].mxu0
        %v1164 = vadd.f32 0.0, %v1163
        %v1165 = vpop.f32.mrb[0].mxu0
        %1166 = vmatprep.mubr.f32.mxu0 0.0
        %1167 = vmatmul.mubr.f32.gmra.mrb[0].mxu0 %v678
        %v1168 = vpop.f32.mrb[0].mxu0
        %v1169 = vadd.f32 0.0, %v1168
        %v1170 = vpop.f32.mrb[0].mxu0
        %1171 = vdwg.mxu0
        %v1172 = vld [vmem:[%s1] sm:$0xff]
        %v1173 = vld [vmem:[%s1 + $0x8] sm:$0xff]
        %v1174 = vld [vmem:[%s1 + $0x10] sm:$0xff]
        %v1175 = vld [vmem:[%s1 + $0x18] sm:$0xff]
        %v1176 = vld [vmem:[%s1 + $0x20] sm:$0xff]
        %v1177 = vld [vmem:[%s1 + $0x28] sm:$0xff]
        %v1178 = vld [vmem:[%s1 + $0x30] sm:$0xff]
        %v1179 = vld [vmem:[%s1 + $0x38] sm:$0xff]
        %v1180 = vmul.f32 %v1172, %v1134
        %v1181 = vmul.f32 %v1173, %v1139
        %v1182 = vmul.f32 %v1174, %v1144
        %v1183 = vmul.f32 %v1175, %v1149
        %v1184 = vmul.f32 %v1176, %v1154
        %v1185 = vmul.f32 %v1177, %v1159
        %v1186 = vmul.f32 %v1178, %v1164
        %v1187 = vmul.f32 %v1179, %v1169
        %v1188 = vld [vmem:[%s2] sm:$0xff]
        %v1189 = vld [vmem:[%s2 + $0x8] sm:$0xff]
        %v1190 = vld [vmem:[%s2 + $0x10] sm:$0xff]
        %v1191 = vld [vmem:[%s2 + $0x18] sm:$0xff]
        %v1192 = vld [vmem:[%s2 + $0x20] sm:$0xff]
        %v1193 = vld [vmem:[%s2 + $0x28] sm:$0xff]
        %v1194 = vld [vmem:[%s2 + $0x30] sm:$0xff]
        %v1195 = vld [vmem:[%s2 + $0x38] sm:$0xff]
        %v1196 = vmul.f32 %v747, %v1180
        %v1197 = vmul.f32 %v752, %v1181
        %v1198 = vmul.f32 %v757, %v1182
        %v1199 = vmul.f32 %v762, %v1183
        %v1200 = vmul.f32 %v767, %v1184
        %v1201 = vmul.f32 %v772, %v1185
        %v1202 = vmul.f32 %v777, %v1186
        %v1203 = vmul.f32 %v782, %v1187
        %v1204 = vsub.f32 %v1188, %v1196
        %v1205 = vsub.f32 %v1189, %v1197
        %v1206 = vsub.f32 %v1190, %v1198
        %v1207 = vsub.f32 %v1191, %v1199
        %v1208 = vsub.f32 %v1192, %v1200
        %v1209 = vsub.f32 %v1193, %v1201
        %v1210 = vsub.f32 %v1194, %v1202
        %v1211 = vsub.f32 %v1195, %v1203
        %v1212 = vld [vmem:[%s5] sm:$0xf]
        %v1213 = vld [vmem:[%s5 + $0x4] sm:$0xf]
        %v1214 = vld [vmem:[%s5 + $0x8] sm:$0xf]
        %v1215 = vld [vmem:[%s5 + $0xc] sm:$0xf]
        %v1216 = vld [vmem:[%s5 + $0x10] sm:$0xf]
        %v1217 = vld [vmem:[%s5 + $0x14] sm:$0xf]
        %v1218 = vld [vmem:[%s5 + $0x18] sm:$0xf]
        %v1219 = vld [vmem:[%s5 + $0x1c] sm:$0xf]
        %v1220 = vld [vmem:[%s6] sm:$0x1]
        %v1221 = vld [vmem:[%s7] sm:$0xf]
        %v1222 = vld [vmem:[%s7 + $0x4] sm:$0xf]
        %v1223 = vld [vmem:[%s7 + $0x8] sm:$0xf]
        %v1224 = vld [vmem:[%s7 + $0xc] sm:$0xf]
        %v1225 = vld [vmem:[%s7 + $0x10] sm:$0xf]
        %v1226 = vld [vmem:[%s7 + $0x14] sm:$0xf]
        %v1227 = vld [vmem:[%s7 + $0x18] sm:$0xf]
        %v1228 = vld [vmem:[%s7 + $0x1c] sm:$0xf]
        %v1229 = vld [vmem:[%s8] sm:$0xff]
        %v1230 = vld [vmem:[%s8 + $0x8] sm:$0xff]
        %v1231 = vld [vmem:[%s8 + $0x10] sm:$0xff]
        %v1232 = vld [vmem:[%s8 + $0x18] sm:$0xff]
        %v1233 = vld [vmem:[%s8 + $0x20] sm:$0xff]
        %v1234 = vld [vmem:[%s8 + $0x28] sm:$0xff]
        %v1235 = vld [vmem:[%s8 + $0x30] sm:$0xff]
        %v1236 = vld [vmem:[%s8 + $0x38] sm:$0xff]
        %1238 = vset.pattern.permute.xlu0 0
        %1239 = vperm.xlu0 %1238, %v1180
        %v1240 = vpop.permute.xlu0 %1239
        %1243 = vset.pattern.permute.xlu0 0
        %1244 = vperm.xlu0 %1243, %v1181
        %v1245 = vpop.permute.xlu0 %1244
        %1248 = vset.pattern.permute.xlu0 0
        %1249 = vperm.xlu0 %1248, %v1182
        %v1250 = vpop.permute.xlu0 %1249
        %1253 = vset.pattern.permute.xlu0 0
        %1254 = vperm.xlu0 %1253, %v1183
        %v1255 = vpop.permute.xlu0 %1254
        %1258 = vset.pattern.permute.xlu0 0
        %1259 = vperm.xlu0 %1258, %v1184
        %v1260 = vpop.permute.xlu0 %1259
        %1263 = vset.pattern.permute.xlu0 0
        %1264 = vperm.xlu0 %1263, %v1185
        %v1265 = vpop.permute.xlu0 %1264
        %1268 = vset.pattern.permute.xlu0 0
        %1269 = vperm.xlu0 %1268, %v1186
        %v1270 = vpop.permute.xlu0 %1269
        %1273 = vset.pattern.permute.xlu0 0
        %1274 = vperm.xlu0 %1273, %v1187
        %v1275 = vpop.permute.xlu0 %1274
        %v1277 = vmul.f32 %v404, %v1240
        %v1278 = vmul.f32 %v405, %v1245
        %v1279 = vmul.f32 %v406, %v1250
        %v1280 = vmul.f32 %v407, %v1255
        %v1281 = vmul.f32 %v408, %v1260
        %v1282 = vmul.f32 %v409, %v1265
        %v1283 = vmul.f32 %v410, %v1270
        %v1284 = vmul.f32 %v411, %v1275
        %1286 = vset.pattern.permute.xlu0 0
        %1287 = vperm.xlu0 %1286, %v1204
        %v1288 = vpop.permute.xlu0 %1287
        %1291 = vset.pattern.permute.xlu0 0
        %1292 = vperm.xlu0 %1291, %v1205
        %v1293 = vpop.permute.xlu0 %1292
        %1296 = vset.pattern.permute.xlu0 0
        %1297 = vperm.xlu0 %1296, %v1206
        %v1298 = vpop.permute.xlu0 %1297
        %1301 = vset.pattern.permute.xlu0 0
        %1302 = vperm.xlu0 %1301, %v1207
        %v1303 = vpop.permute.xlu0 %1302
        %1306 = vset.pattern.permute.xlu0 0
        %1307 = vperm.xlu0 %1306, %v1208
        %v1308 = vpop.permute.xlu0 %1307
        %1311 = vset.pattern.permute.xlu0 0
        %1312 = vperm.xlu0 %1311, %v1209
        %v1313 = vpop.permute.xlu0 %1312
        %1316 = vset.pattern.permute.xlu0 0
        %1317 = vperm.xlu0 %1316, %v1210
        %v1318 = vpop.permute.xlu0 %1317
        %1321 = vset.pattern.permute.xlu0 0
        %1322 = vperm.xlu0 %1321, %v1211
        %v1323 = vpop.permute.xlu0 %1322
        %v1325 = vadd.f32 %v1277, %v1288
        %v1326 = vadd.f32 %v1278, %v1293
        %v1327 = vadd.f32 %v1279, %v1298
        %v1328 = vadd.f32 %v1280, %v1303
        %v1329 = vadd.f32 %v1281, %v1308
        %v1330 = vadd.f32 %v1282, %v1313
        %v1331 = vadd.f32 %v1283, %v1318
        %v1332 = vadd.f32 %v1284, %v1323
        %v1333 = vpack.c.bf16 %v1326, %v1325
        %v1334 = vpack.c.bf16 %v1328, %v1327
        %v1335 = vpack.c.bf16 %v1330, %v1329
        %v1336 = vpack.c.bf16 %v1332, %v1331
        %1337 = vxpose.xlu0.c.b16.start [1/8] %v1333, 128
        %1338 = vxpose.xlu0.c.b16.cont [2/8] %v1334, 128
        %1339 = vxpose.xlu0.c.b16.cont [3/8] %v1335, 128
        %1340 = vxpose.xlu0.c.b16.cont [4/8] %v1336, 128
        %1341 = vxpose.xlu0.c.b16.cont [5/8] 0, 128
        %1342 = vxpose.xlu0.c.b16.cont [6/8] 0, 128
        %1343 = vxpose.xlu0.c.b16.cont [7/8] 0, 128
        %1344 = vxpose.xlu0.c.b16.end [8/8] 0, 128
        %v1345 = vpop.trf.xlu0
        %v1346 = vpop.trf.xlu0
        %v1347 = vpop.trf.xlu0
        %v1348 = vpop.trf.xlu0
        %v1349 = vpop.trf.xlu0
        %v1350 = vpop.trf.xlu0
        %v1351 = vpop.trf.xlu0
        %v1352 = vpop.trf.xlu0
        %v1354 = vlaneseq
        %v1355 = vshrl.u32 %v1354, 7
        %v1356 = vsub.s32 0, %v1355
        %v1357 = vrot.slane %v1220, %v1356
        %v1367 = vunpack.c.l.b16 %v1212
        %v1368 = vunpack.c.l.b16 %v1213
        %v1369 = vunpack.c.l.b16 %v1214
        %v1370 = vunpack.c.l.b16 %v1215
        %v1371 = vunpack.c.l.b16 %v1216
        %v1372 = vunpack.c.l.b16 %v1217
        %v1373 = vunpack.c.l.b16 %v1218
        %v1374 = vunpack.c.l.b16 %v1219
        %v1375 = vpack.c.b16 %v1368, %v1367
        %v1376 = vpack.c.b16 %v1370, %v1369
        %v1377 = vpack.c.b16 %v1372, %v1371
        %v1378 = vpack.c.b16 %v1374, %v1373
        %v1384 = vsel %vm412, %v1345, 0
        %v1387 = vsel %vm412, %v1346, 0
        %v1390 = vsel %vm412, %v1347, 0
        %v1393 = vsel %vm412, %v1348, 0
        %1395 = vmatprep.subr.bf16.mxu0 0
        %1396 = vmatpush1.bf16.msra.mxu0 %v1375
        %1397 = vmatprep.subr.bf16.mxu0 0
        %1398 = vmatpush1.bf16.msra.mxu0 %v1376
        %1399 = vmatprep.subr.bf16.mxu0 0
        %1400 = vmatpush1.bf16.msra.mxu0 %v1377
        %1401 = vmatprep.subr.bf16.mxu0 0
        %1402 = vmatpush1.bf16.msra.mxu0 %v1378
        %1403 = vmatprep.subr.bf16.mxu0 0
        %1404 = vmatpush1.bf16.msra.mxu0 0
        %1405 = vmatprep.subr.bf16.mxu0 0
        %1406 = vmatpush1.bf16.msra.mxu0 0
        %1407 = vmatprep.subr.bf16.mxu0 0
        %1408 = vmatpush1.bf16.msra.mxu0 0
        %1409 = vmatprep.subr.bf16.mxu0 0
        %1410 = vmatpush1.bf16.msra.mxu0 0
        %1411 = vmatprep.subr.bf16.mxu0 0
        %1412 = vmatpush1.bf16.msra.mxu0 0
        %1413 = vmatprep.subr.bf16.mxu0 0
        %1414 = vmatpush1.bf16.msra.mxu0 0
        %1415 = vmatprep.subr.bf16.mxu0 0
        %1416 = vmatpush1.bf16.msra.mxu0 0
        %1417 = vmatprep.subr.bf16.mxu0 0
        %1418 = vmatpush1.bf16.msra.mxu0 0
        %1419 = vmatprep.subr.bf16.mxu0 0
        %1420 = vmatpush1.bf16.msra.mxu0 0
        %1421 = vmatprep.subr.bf16.mxu0 0
        %1422 = vmatpush1.bf16.msra.mxu0 0
        %1423 = vmatprep.subr.bf16.mxu0 0
        %1424 = vmatpush1.bf16.msra.mxu0 0
        %1425 = vmatprep.subr.bf16.mxu0 0
        %1426 = vmatpush1.bf16.msra.mxu0 0
        %1427 = vmatprep.mubr.bf16.mxu0 0
        %1428 = vmatmul.mubr.bf16.gmra.mrb[0].mxu0 %v1384
        %v1429 = vpop.f32.mrb[0].mxu0
        %v1430 = vadd.f32 %v1357, %v1429
        %v1431 = vpop.f32.mrb[0].mxu0
        %v1432 = vpop.f32.mrb[0].mxu0
        %v1433 = vadd.f32 %v1357, %v1432
        %v1434 = vpop.f32.mrb[0].mxu0
        %1435 = vmatprep.mubr.bf16.mxu0 0
        %1436 = vmatmul.mubr.bf16.gmra.mrb[0].mxu0 %v1387
        %v1437 = vpop.f32.mrb[0].mxu0
        %v1438 = vadd.f32 %v1357, %v1437
        %v1439 = vpop.f32.mrb[0].mxu0
        %v1440 = vpop.f32.mrb[0].mxu0
        %v1441 = vadd.f32 %v1357, %v1440
        %v1442 = vpop.f32.mrb[0].mxu0
        %1443 = vmatprep.mubr.bf16.mxu0 0
        %1444 = vmatmul.mubr.bf16.gmra.mrb[0].mxu0 %v1390
        %v1445 = vpop.f32.mrb[0].mxu0
        %v1446 = vadd.f32 %v1357, %v1445
        %v1447 = vpop.f32.mrb[0].mxu0
        %v1448 = vpop.f32.mrb[0].mxu0
        %v1449 = vadd.f32 %v1357, %v1448
        %v1450 = vpop.f32.mrb[0].mxu0
        %1451 = vmatprep.mubr.bf16.mxu0 0
        %1452 = vmatmul.mubr.bf16.gmra.mrb[0].mxu0 %v1393
        %v1453 = vpop.f32.mrb[0].mxu0
        %v1454 = vadd.f32 %v1357, %v1453
        %v1455 = vpop.f32.mrb[0].mxu0
        %v1456 = vpop.f32.mrb[0].mxu0
        %v1457 = vadd.f32 %v1357, %v1456
        %v1458 = vpop.f32.mrb[0].mxu0
        %1459 = vdwg.mxu0
        %1461 = vset.pattern.permute.xlu0 0
        %1462 = vperm.xlu0 %1461, %v1229
        %v1463 = vpop.permute.xlu0 %1462
        %1466 = vset.pattern.permute.xlu0 0
        %1467 = vperm.xlu0 %1466, %v1230
        %v1468 = vpop.permute.xlu0 %1467
        %1471 = vset.pattern.permute.xlu0 0
        %1472 = vperm.xlu0 %1471, %v1231
        %v1473 = vpop.permute.xlu0 %1472
        %1476 = vset.pattern.permute.xlu0 0
        %1477 = vperm.xlu0 %1476, %v1232
        %v1478 = vpop.permute.xlu0 %1477
        %1481 = vset.pattern.permute.xlu0 0
        %1482 = vperm.xlu0 %1481, %v1233
        %v1483 = vpop.permute.xlu0 %1482
        %1486 = vset.pattern.permute.xlu0 0
        %1487 = vperm.xlu0 %1486, %v1234
        %v1488 = vpop.permute.xlu0 %1487
        %1491 = vset.pattern.permute.xlu0 0
        %1492 = vperm.xlu0 %1491, %v1235
        %v1493 = vpop.permute.xlu0 %1492
        %1496 = vset.pattern.permute.xlu0 0
        %1497 = vperm.xlu0 %1496, %v1236
        %v1498 = vpop.permute.xlu0 %1497
        %v1508 = vunpack.c.l.b16 %v1221
        %v1509 = vunpack.c.l.b16 %v1222
        %v1510 = vunpack.c.l.b16 %v1223
        %v1511 = vunpack.c.l.b16 %v1224
        %v1512 = vunpack.c.l.b16 %v1225
        %v1513 = vunpack.c.l.b16 %v1226
        %v1514 = vunpack.c.l.b16 %v1227
        %v1515 = vunpack.c.l.b16 %v1228
        %v1516 = vpack.c.b16 %v1509, %v1508
        %v1517 = vpack.c.b16 %v1511, %v1510
        %v1518 = vpack.c.b16 %v1513, %v1512
        %v1519 = vpack.c.b16 %v1515, %v1514
        %v1521 = vsel %vm412, %v1516, 0
        %v1524 = vsel %vm412, %v1517, 0
        %v1527 = vsel %vm412, %v1518, 0
        %v1530 = vsel %vm412, %v1519, 0
        %1532 = vmatprep.subr.bf16.mxu0 0
        %1533 = vmatpush1.bf16.msra.mxu0 %v1333
        %1534 = vmatprep.subr.bf16.mxu0 0
        %1535 = vmatpush1.bf16.msra.mxu0 %v1334
        %1536 = vmatprep.subr.bf16.mxu0 0
        %1537 = vmatpush1.bf16.msra.mxu0 %v1335
        %1538 = vmatprep.subr.bf16.mxu0 0
        %1539 = vmatpush1.bf16.msra.mxu0 %v1336
        %1540 = vmatprep.subr.bf16.mxu0 0
        %1541 = vmatpush1.bf16.msra.mxu0 0
        %1542 = vmatprep.subr.bf16.mxu0 0
        %1543 = vmatpush1.bf16.msra.mxu0 0
        %1544 = vmatprep.subr.bf16.mxu0 0
        %1545 = vmatpush1.bf16.msra.mxu0 0
        %1546 = vmatprep.subr.bf16.mxu0 0
        %1547 = vmatpush1.bf16.msra.mxu0 0
        %1548 = vmatprep.subr.bf16.mxu0 0
        %1549 = vmatpush1.bf16.msra.mxu0 0
        %1550 = vmatprep.subr.bf16.mxu0 0
        %1551 = vmatpush1.bf16.msra.mxu0 0
        %1552 = vmatprep.subr.bf16.mxu0 0
        %1553 = vmatpush1.bf16.msra.mxu0 0
        %1554 = vmatprep.subr.bf16.mxu0 0
        %1555 = vmatpush1.bf16.msra.mxu0 0
        %1556 = vmatprep.subr.bf16.mxu0 0
        %1557 = vmatpush1.bf16.msra.mxu0 0
        %1558 = vmatprep.subr.bf16.mxu0 0
        %1559 = vmatpush1.bf16.msra.mxu0 0
        %1560 = vmatprep.subr.bf16.mxu0 0
        %1561 = vmatpush1.bf16.msra.mxu0 0
        %1562 = vmatprep.subr.bf16.mxu0 0
        %1563 = vmatpush1.bf16.msra.mxu0 0
        %1564 = vmatprep.mubr.bf16.mxu0 0
        %1565 = vmatmul.mubr.bf16.gmra.mrb[0].mxu0 %v1521
        %v1566 = vpop.f32.mrb[0].mxu0
        %v1567 = vadd.f32 %v1463, %v1566
        %v1568 = vpop.f32.mrb[0].mxu0
        %v1569 = vpop.f32.mrb[0].mxu0
        %v1570 = vadd.f32 %v1468, %v1569
        %v1571 = vpop.f32.mrb[0].mxu0
        %1572 = vmatprep.mubr.bf16.mxu0 0
        %1573 = vmatmul.mubr.bf16.gmra.mrb[0].mxu0 %v1524
        %v1574 = vpop.f32.mrb[0].mxu0
        %v1575 = vadd.f32 %v1473, %v1574
        %v1576 = vpop.f32.mrb[0].mxu0
        %v1577 = vpop.f32.mrb[0].mxu0
        %v1578 = vadd.f32 %v1478, %v1577
        %v1579 = vpop.f32.mrb[0].mxu0
        %1580 = vmatprep.mubr.bf16.mxu0 0
        %1581 = vmatmul.mubr.bf16.gmra.mrb[0].mxu0 %v1527
        %v1582 = vpop.f32.mrb[0].mxu0
        %v1583 = vadd.f32 %v1483, %v1582
        %v1584 = vpop.f32.mrb[0].mxu0
        %v1585 = vpop.f32.mrb[0].mxu0
        %v1586 = vadd.f32 %v1488, %v1585
        %v1587 = vpop.f32.mrb[0].mxu0
        %1588 = vmatprep.mubr.bf16.mxu0 0
        %1589 = vmatmul.mubr.bf16.gmra.mrb[0].mxu0 %v1530
        %v1590 = vpop.f32.mrb[0].mxu0
        %v1591 = vadd.f32 %v1493, %v1590
        %v1592 = vpop.f32.mrb[0].mxu0
        %v1593 = vpop.f32.mrb[0].mxu0
        %v1594 = vadd.f32 %v1498, %v1593
        %v1595 = vpop.f32.mrb[0].mxu0
        %1596 = vdwg.mxu0
        %v1597 = vpack.c.bf16 %v1433, %v1430
        %v1598 = vpack.c.bf16 %v1441, %v1438
        %v1599 = vpack.c.bf16 %v1449, %v1446
        %v1600 = vpack.c.bf16 %v1457, %v1454
        %v1605 = vunpack.c.l.b16 %v1597
        %v1606 = vunpack.c.h.b16 %v1597
        %v1607 = vunpack.c.l.b16 %v1598
        %v1608 = vunpack.c.h.b16 %v1598
        %v1609 = vunpack.c.l.b16 %v1599
        %v1610 = vunpack.c.h.b16 %v1599
        %v1611 = vunpack.c.l.b16 %v1600
        %v1612 = vunpack.c.h.b16 %v1600
        %v1613 = vpack.c.b16 %v1605, %v1605
        %v1614 = vpack.c.b16 %v1606, %v1606
        %v1615 = vpack.c.b16 %v1607, %v1607
        %v1616 = vpack.c.b16 %v1608, %v1608
        %v1617 = vpack.c.b16 %v1609, %v1609
        %v1618 = vpack.c.b16 %v1610, %v1610
        %v1619 = vpack.c.b16 %v1611, %v1611
        %v1620 = vpack.c.b16 %v1612, %v1612
        %vm1629 = vcmask 519168
        %1630 = vst.msk [vmem:[%s383] sm:$0xf] %vm1629, %v1613
        %1631 = vst.msk [vmem:[%s383 + $0x4] sm:$0xf] %vm1629, %v1614
        %1632 = vst.msk [vmem:[%s383 + $0x8] sm:$0xf] %vm1629, %v1615
        %1633 = vst.msk [vmem:[%s383 + $0xc] sm:$0xf] %vm1629, %v1616
        %1634 = vst.msk [vmem:[%s383 + $0x10] sm:$0xf] %vm1629, %v1617
        %1635 = vst.msk [vmem:[%s383 + $0x14] sm:$0xf] %vm1629, %v1618
        %1636 = vst.msk [vmem:[%s383 + $0x18] sm:$0xf] %vm1629, %v1619
        %1637 = vst.msk [vmem:[%s383 + $0x1c] sm:$0xf] %vm1629, %v1620
        %1638 = vrot.lane.b32.xlu0 %v1613, 64
        %v1639 = vpop.permute.xlu0 %1638
        %1640 = vrot.lane.b32.xlu0 %v1614, 64
        %v1641 = vpop.permute.xlu0 %1640
        %1642 = vrot.lane.b32.xlu0 %v1615, 64
        %v1643 = vpop.permute.xlu0 %1642
        %1644 = vrot.lane.b32.xlu0 %v1616, 64
        %v1645 = vpop.permute.xlu0 %1644
        %1646 = vrot.lane.b32.xlu0 %v1617, 64
        %v1647 = vpop.permute.xlu0 %1646
        %1648 = vrot.lane.b32.xlu0 %v1618, 64
        %v1649 = vpop.permute.xlu0 %1648
        %1650 = vrot.lane.b32.xlu0 %v1619, 64
        %v1651 = vpop.permute.xlu0 %1650
        %1652 = vrot.lane.b32.xlu0 %v1620, 64
        %v1653 = vpop.permute.xlu0 %1652
        %1662 = vst.msk [vmem:[%s397] sm:$0xf] %vm1629, %v1639
        %1663 = vst.msk [vmem:[%s397 + $0x4] sm:$0xf] %vm1629, %v1641
        %1664 = vst.msk [vmem:[%s397 + $0x8] sm:$0xf] %vm1629, %v1643
        %1665 = vst.msk [vmem:[%s397 + $0xc] sm:$0xf] %vm1629, %v1645
        %1666 = vst.msk [vmem:[%s397 + $0x10] sm:$0xf] %vm1629, %v1647
        %1667 = vst.msk [vmem:[%s397 + $0x14] sm:$0xf] %vm1629, %v1649
        %1668 = vst.msk [vmem:[%s397 + $0x18] sm:$0xf] %vm1629, %v1651
        %1669 = vst.msk [vmem:[%s397 + $0x1c] sm:$0xf] %vm1629, %v1653
        %v1670 = vpack.c.bf16 %v1570, %v1567
        %v1671 = vpack.c.bf16 %v1578, %v1575
        %v1672 = vpack.c.bf16 %v1586, %v1583
        %v1673 = vpack.c.bf16 %v1594, %v1591
        %v1678 = vunpack.c.l.b16 %v1670
        %v1679 = vunpack.c.h.b16 %v1670
        %v1680 = vunpack.c.l.b16 %v1671
        %v1681 = vunpack.c.h.b16 %v1671
        %v1682 = vunpack.c.l.b16 %v1672
        %v1683 = vunpack.c.h.b16 %v1672
        %v1684 = vunpack.c.l.b16 %v1673
        %v1685 = vunpack.c.h.b16 %v1673
        %v1686 = vpack.c.b16 %v1678, %v1678
        %v1687 = vpack.c.b16 %v1679, %v1679
        %v1688 = vpack.c.b16 %v1680, %v1680
        %v1689 = vpack.c.b16 %v1681, %v1681
        %v1690 = vpack.c.b16 %v1682, %v1682
        %v1691 = vpack.c.b16 %v1683, %v1683
        %v1692 = vpack.c.b16 %v1684, %v1684
        %v1693 = vpack.c.b16 %v1685, %v1685
        %1702 = vst.msk [vmem:[%s390] sm:$0xf] %vm1629, %v1686
        %1703 = vst.msk [vmem:[%s390 + $0x4] sm:$0xf] %vm1629, %v1687
        %1704 = vst.msk [vmem:[%s390 + $0x8] sm:$0xf] %vm1629, %v1688
        %1705 = vst.msk [vmem:[%s390 + $0xc] sm:$0xf] %vm1629, %v1689
        %1706 = vst.msk [vmem:[%s390 + $0x10] sm:$0xf] %vm1629, %v1690
        %1707 = vst.msk [vmem:[%s390 + $0x14] sm:$0xf] %vm1629, %v1691
        %1708 = vst.msk [vmem:[%s390 + $0x18] sm:$0xf] %vm1629, %v1692
        %1709 = vst.msk [vmem:[%s390 + $0x1c] sm:$0xf] %vm1629, %v1693
        %s1710 = sand.u32 %s231, 1
        %s1711 = scalar_lea.sflag [#allocation3], %s1710
        %s1712 = sand.u32 %s231, 1
        %s1713 = smul.addr %s1712, 32
        %s1714 = scalar_lea.vmem [#allocation2], %s1713
        %s1715 = sand.u32 %s29, 1
        %s1716 = scalar_lea.sflag [#allocation5], %s1715
        %s1717 = sand.u32 %s257, 1
        %s1718 = smul.addr %s1717, 32
        %s1719 = scalar_lea.vmem [#allocation4], %s1718
        %s1720 = sand.u32 %s29, 1
        %s1721 = scalar_lea.sflag [#allocation5], %s1720
        %s1722 = sand.u32 %s283, 1
        %s1723 = smul.addr %s1722, 32
        %s1724 = scalar_lea.vmem [#allocation6], %s1723
        // Predicated region
        $region57: #{tpu_custom_call.1} parent=55 // pred_check
          %p1725 = pneg %p241
        $region58: #{tpu_custom_call.1} parent=55 // pred_check_branch
          %1727 = sbr.rel (%p1725) target = $region60
        $region59: #{tpu_custom_call.1} parent=55 // pred_region
          %s1729 = ssub.s32 512, 512
          %1730 = vsyncadd %s1711, %s1729
          %s1731 = smul.addr %s29, 8
          %s1732 = smul.addr %s1731, 64
          %s1733 = scalar_lea.hbm %s9, %s1732
          %s1734 = sshll.u32 %s1714, 4
          %s1735 = int_to_ptr.vmem [resolvable:$true] %s1734
          %1740 = dma.vmem_to_hbm [thread:$0]  %s1735, 512, %s1733, %s1711, 64, 64, 4
        $region60: #{tpu_custom_call.1} parent=55 // pred_fallthru
          _
        // Predicated region
        $region61: #{tpu_custom_call.1} parent=55 // pred_check
          %p1741 = pneg %p267
        $region62: #{tpu_custom_call.1} parent=55 // pred_check_branch
          %1743 = sbr.rel (%p1741) target = $region64
        $region63: #{tpu_custom_call.1} parent=55 // pred_region
          %s1745 = ssub.s32 512, 512
          %1746 = vsyncadd %s1716, %s1745
          %s1747 = smul.addr %s29, 8
          %s1748 = smul.addr %s1747, 64
          %s1749 = scalar_lea.hbm %s10, %s1748
          %s1750 = sshll.u32 %s1719, 4
          %s1751 = int_to_ptr.vmem [resolvable:$true] %s1750
          %1756 = dma.vmem_to_hbm [thread:$0]  %s1751, 512, %s1749, %s1716, 64, 64, 4
        $region64: #{tpu_custom_call.1} parent=55 // pred_fallthru
          _
        // Predicated region
        $region65: #{tpu_custom_call.1} parent=55 // pred_check
          %p1757 = pneg %p293
        $region66: #{tpu_custom_call.1} parent=55 // pred_check_branch
          %1759 = sbr.rel (%p1757) target = $region68
        $region67: #{tpu_custom_call.1} parent=55 // pred_region
          %s1761 = ssub.s32 512, 512
          %1762 = vsyncadd %s1721, %s1761
          %s1763 = smul.addr %s29, 8
          %s1764 = smul.addr %s1763, 64
          %s1765 = scalar_lea.hbm %s11, %s1764
          %s1766 = sshll.u32 %s1724, 4
          %s1767 = int_to_ptr.vmem [resolvable:$true] %s1766
          %1772 = dma.vmem_to_hbm [thread:$0]  %s1767, 512, %s1765, %s1721, 64, 64, 4
        $region68: #{tpu_custom_call.1} parent=55 // pred_fallthru
          _
      $region56: #{tpu_custom_call.1} parent=5 // pred_fallthru
        _
      %p1773 = scmp.le.s32.totalorder 2, %s24
      // Predicated region
      $region69: #{tpu_custom_call.1} parent=5 // pred_check
        %p1774 = pneg %p1773
      $region70: #{tpu_custom_call.1} parent=5 // pred_check_branch
        %1776 = sbr.rel (%p1774) target = $region72
      $region71: #{tpu_custom_call.1} parent=5 // pred_region
        %s1777 = ssub.s32 %s24, 2
        // Predicated region
        $region73: #{tpu_custom_call.1} parent=71 // pred_check
          %p1778 = pneg %p247
        $region74: #{tpu_custom_call.1} parent=71 // pred_check_branch
          %1780 = sbr.rel (%p1778) target = $region76
        $region75: #{tpu_custom_call.1} parent=71 // pred_region
          %s1781 = sand.u32 %s232, 1
          %s1782 = scalar_lea.sflag [#allocation3], %s1781
          %s1783 = sand.u32 %s232, 1
          %s1784 = smul.addr %s1783, 32
          %s1785 = scalar_lea.vmem [#allocation2], %s1784
          %1786 = dma.done %s1782, 512
        $region76: #{tpu_custom_call.1} parent=71 // pred_fallthru
          _
        // Predicated region
        $region77: #{tpu_custom_call.1} parent=71 // pred_check
          %p1787 = pneg %p273
        $region78: #{tpu_custom_call.1} parent=71 // pred_check_branch
          %1789 = sbr.rel (%p1787) target = $region80
        $region79: #{tpu_custom_call.1} parent=71 // pred_region
          %s1790 = sand.u32 %s30, 1
          %s1791 = scalar_lea.sflag [#allocation5], %s1790
          %s1792 = sand.u32 %s258, 1
          %s1793 = smul.addr %s1792, 32
          %s1794 = scalar_lea.vmem [#allocation4], %s1793
          %1795 = dma.done %s1791, 512
        $region80: #{tpu_custom_call.1} parent=71 // pred_fallthru
          _
        // Predicated region
        $region81: #{tpu_custom_call.1} parent=71 // pred_check
          %p1796 = pneg %p299
        $region82: #{tpu_custom_call.1} parent=71 // pred_check_branch
          %1798 = sbr.rel (%p1796) target = $region84
        $region83: #{tpu_custom_call.1} parent=71 // pred_region
          %s1799 = sand.u32 %s30, 1
          %s1800 = scalar_lea.sflag [#allocation5], %s1799
          %s1801 = sand.u32 %s284, 1
          %s1802 = smul.addr %s1801, 32
          %s1803 = scalar_lea.vmem [#allocation6], %s1802
          %1804 = dma.done %s1800, 512
        $region84: #{tpu_custom_call.1} parent=71 // pred_fallthru
          _
      $region72: #{tpu_custom_call.1} parent=5 // pred_fallthru
        _
    $region6: #{tpu_custom_call.1} parent=1 // loop_footer
      %s28 = sadd.s32 1, %s24
    $region7: #{tpu_custom_call.1} parent=1 // loop_footer_branch
      %23 = sbr.rel target = $region3
    $region8: #{tpu_custom_call.1} parent=1 // loop_exit
      _
    %1805 = vsyncpa [#allocation3], 1
    %s1806 = scalar_lea.sflag [#allocation3], 1
    %1807 = vsyncpa %s1806, 1
    %1808 = vsyncpa [#allocation5], 1
    %s1809 = scalar_lea.sflag [#allocation5], 1
    %1810 = vsyncpa %s1809, 1

</llo_original>
